<compile_context>
chip_gen: v5e
topology: v5e:2x2
jax: 0.10.0
libtpu: 0.0.40
codegen_flags: <defaults>
</compile_context>

<pallas_src>
import functools

import jax
import jax.numpy as jnp
from jax.experimental import pallas as pl
from jax.experimental.pallas import tpu as pltpu

MXU_DTYPE = jnp.bfloat16   # matmul operand dtype (f32 accumulation is kept)


# -----------------------------------------------------------------------------
# One fused kernel for the entire forward pass (no grid: body runs once).
# -----------------------------------------------------------------------------
def _fused_forward_kernel(*refs, n_layers, n_edge, n_mlp, fold_emb, residual_flags):
    per_layer = 4 + 2 * n_mlp        # w_all, bs, (mlp_w, mlp_b)*n_mlp, gamma, beta
    it = iter(refs)
    node_ref, adj_ref = next(it), next(it)
    emb_w_ref = None if fold_emb else next(it)
    layer_refs = [[next(it) for _ in range(per_layer)] for _ in range(n_layers)]
    out_w_ref, out_b_ref = next(it), next(it)
    logit_ref, repr_ref = next(it), next(it)

    B, N, A1 = node_ref.shape        # A1 = n_atoms + 1 (ones-augmented for the bias)
    inv_rows = 1.0 / (B * N)

    # --- layer-0 input -----------------------------------------------------------
    if fold_emb:
        # embedding Linear folded into layer 0's fused weight at init (exact).
        x = node_ref[...].reshape(B * N, A1)                       # f32
    else:
        x = jnp.dot(node_ref[...].reshape(B * N, A1).astype(MXU_DTYPE),
                    emb_w_ref[...], preferred_element_type=jnp.float32)

    # --- n_iter x (WLSMLPLayer + fused BatchNorm1d) --------------------------------
    for l in range(n_layers):
        lrefs = layer_refs[l]
        w_all_ref, bs_ref = lrefs[0], lrefs[1]
        mlp_refs = lrefs[2:2 + 2 * n_mlp]
        gamma_ref, beta_ref = lrefs[-2], lrefs[-1]

        din = x.shape[1]
        dout = w_all_ref.shape[1]

        # Message passing on the MXU: one batched (N,N)@(N,din) matmul per edge
        # type (static unroll, E is tiny).  Only one (B,N,N) adjacency slab is
        # live at a time; adj stays bf16 in its ref.
        x3 = x.reshape(B, N, din)
        x3_bf = x3.astype(MXU_DTYPE)
        parts = [x3]                                               # self features
        for e in range(n_edge):
            a_e = adj_ref[:, e, :, :]                              # (B, N, N) bf16
            parts.append(jnp.einsum('bnm,bmd->bnd', a_e, x3_bf,
                                    preferred_element_type=jnp.float32))
        m = jnp.concatenate(parts, axis=-1)                        # (B, N, (1+E)*din)

        # single fused projection [W_self; W_e0; ...; W_e{E-1}] -> (B*N, dout)
        acc = jnp.dot(m.reshape(B * N, (1 + n_edge) * din).astype(MXU_DTYPE),
                      w_all_ref[...], preferred_element_type=jnp.float32)
        x2 = jnp.tanh(acc + bs_ref[...])

        for li in range(n_mlp):                                    # tanh-MLP
            w_ref, b_ref = mlp_refs[2 * li], mlp_refs[2 * li + 1]
            x2 = jnp.tanh(jnp.dot(x2.astype(MXU_DTYPE), w_ref[...],
                                  preferred_element_type=jnp.float32) + b_ref[...])

        if residual_flags[l]:                                      # residual (dims permit)
            x2 = x2 + x

        # fused BatchNorm1d: training-mode stats over the B*N rows, ONE pass
        # (sum + sum-of-squares; var = E[x^2] - E[x]^2, no (x - mean) temp).
        s1 = jnp.sum(x2, axis=0, keepdims=True)
        s2 = jnp.sum(x2 * x2, axis=0, keepdims=True)
        mean = s1 * inv_rows
        var = s2 * inv_rows - mean * mean
        x2 = (x2 - mean) * jax.lax.rsqrt(var + 1e-5) * gamma_ref[...] + beta_ref[...]

        x = x2                                                     # input to next layer

    # --- head: mean over nodes, (D,1) projection as VPU multiply + lane reduce ----
    dout = x.shape[1]
    g = jnp.mean(x.reshape(B, N, dout), axis=1)                    # (B, dout)
    repr_ref[...] = g.astype(repr_ref.dtype)
    # TODO(synk): for large B, pack logit + graph_repr into one lane-padded output
    # slab to avoid masked (B,1)/(B,out_dim) partial stores.
    logit = jnp.sum(g * out_w_ref[...], axis=-1, keepdims=True) + out_b_ref[...]
    logit_ref[...] = logit.astype(logit_ref.dtype)


# -----------------------------------------------------------------------------
# Wrapper: one pallas_call, all operands as whole-array VMEM blocks.
# -----------------------------------------------------------------------------
def wls_discriminator_forward(params, adj, hidden, node, activation=None):
    # adj: (B, N, N, n_bonds), node: (B, N, n_atoms); `hidden` is unused
    # (the PyTorch forward never touches it either).
    B, N, _, n_bonds = adj.shape
    n_edge = n_bonds - 1
    layers = params['layers']
    n_layers = len(layers)
    n_mlp = len(layers[0]['mlp'])
    out_dim = params['out_w'].shape[1]
    fold_emb = 'emb_w' not in params

    # --- one-time input re-layout (amortized over all n_iter layers) --------------
    # drop bond channel 0, put edge type on a leading axis and neighbor index on
    # the lane axis -> lane-dense bf16 (B, E, N, N); exactly the PyTorch permute.
    adj_r = jnp.transpose(adj[:, :, :, 1:], (0, 3, 1, 2)).astype(MXU_DTYPE)
    # append a constant-1 feature so the embedding bias rides inside the
    # (possibly folded) embedding weight.
    node_aug = jnp.concatenate(
        [node.astype(jnp.float32), jnp.ones((B, N, 1), jnp.float32)], axis=-1)

    # static residual schedule (residual only when layer in/out dims match).
    douts = [lp['w_all'].shape[1] for lp in layers]
    din0 = -1 if fold_emb else params['emb_w'].shape[1]
    dins = [din0] + douts[:-1]
    residual_flags = tuple(di == do for di, do in zip(dins, douts))

    kernel = functools.partial(
        _fused_forward_kernel, n_layers=n_layers, n_edge=n_edge, n_mlp=n_mlp,
        fold_emb=fold_emb, residual_flags=residual_flags)

    args = [node_aug, adj_r]
    if not fold_emb:
        args.append(params['emb_w'])
    for lp in layers:
        args += [lp['w_all'], lp['bs']]
        for w, b in lp['mlp']:
            args += [w, b]
        args += [lp['gamma'], lp['beta']]
    args += [params['out_w'], params['out_b']]

    # VMEM budget from the actual working set (inputs + weights + live f32
    # activation temps), clamped to [32 MiB, 64 MiB] so it lowers on v5e
    # (16 MiB scoped default, 128 MiB physical) through v7x (64 MiB physical).
    def _nbytes(a):
        return a.size * a.dtype.itemsize
    max_w = max(max(lp['w_all'].shape) for lp in layers)
    work_set = (_nbytes(adj_r) + _nbytes(node_aug)
                + sum(_nbytes(a) for a in jax.tree_util.tree_leaves(params))
                + 8 * (B * N) * max_w * 4          # live f32 activation temps (generous)
                + (1 + n_edge) * B * N * N * 4)    # per-edge message temps
    vmem_limit = int(min(max(2 * work_set, 32 * 1024 * 1024), 64 * 1024 * 1024))

    logit, graph_repr = pl.pallas_call(
        kernel,
        out_shape=(jax.ShapeDtypeStruct((B, 1), jnp.float32),
                   jax.ShapeDtypeStruct((B, out_dim), jnp.float32)),
        compiler_params=pltpu.CompilerParams(vmem_limit_bytes=vmem_limit),
    )(*args)
    output = logit if activation is None else activation(logit)
    return output, graph_repr


# -----------------------------------------------------------------------------
# Deterministic synthetic parameter init (weights stored pre-fused / pre-cast).
# -----------------------------------------------------------------------------
def init_params(key, n_atoms, n_bonds, n_iter, in_dim, hidden_dim, out_dim,
                n_mlp_layer, scale_mlp):
    hidden_dim = hidden_dim + hidden_dim % 2
    out_dim = out_dim + out_dim % 2
    n_edge = n_bonds - 1
    dims = ([(in_dim, hidden_dim)]
            + [(hidden_dim, hidden_dim)] * (n_iter - 2)
            + [(hidden_dim, out_dim)])

    keys = iter(jax.random.split(key, 1024))

    def nrm(shape, scale=0.1):
        return (scale * jax.random.normal(next(keys), shape)).astype(jnp.float32)

    emb_w = nrm((n_atoms, in_dim))
    emb_b = nrm((1, in_dim), 0.05)
    emb_w_aug = jnp.concatenate([emb_w, emb_b], axis=0)      # (n_atoms+1, in_dim)

    # fold the embedding into layer 0 iff layer 0 cannot take a residual.
    fold_emb = (in_dim != hidden_dim)

    params = {
        'out_w': nrm((1, out_dim)),                           # used on the VPU: keep f32
        'out_b': jnp.zeros((1, 1), jnp.float32),
        'layers': [],
    }
    if not fold_emb:
        params['emb_w'] = emb_w_aug.astype(MXU_DTYPE)

    for l, (din, dout) in enumerate(dims):
        ws = nrm((din, dout))
        we = nrm((n_edge, din, dout))
        blocks = [ws] + [we[e] for e in range(n_edge)]
        if l == 0 and fold_emb:
            blocks = [emb_w_aug @ b for b in blocks]          # exact fold (bias included)
        # aggregate-then-project layout: [W_self; W_edge_0; ...; W_edge_{E-1}]
        w_all = jnp.concatenate(blocks, axis=0)               # ((1+E)*din', dout)
        # TODO(synk): for non-trivial widths on v6e/v7x, pad dout / MLP hidden to
        # multiples of 256 to fill the 2x256x256 MXU (128 already optimal on v5e).
        dh = dout * scale_mlp
        mlp, d_prev = [], dout
        for li in range(n_mlp_layer):
            d_next = dout if li == n_mlp_layer - 1 else dh
            mlp.append((nrm((d_prev, d_next)).astype(MXU_DTYPE),
                        jnp.zeros((1, d_next), jnp.float32)))
            d_prev = d_next
        params['layers'].append({
            'w_all': w_all.astype(MXU_DTYPE),
            'bs': jnp.zeros((1, dout), jnp.float32),
            'mlp': mlp,
            'gamma': jnp.ones((1, dout), jnp.float32),
            'beta': jnp.zeros((1, dout), jnp.float32),
        })
    return params


if __name__ == "__main__":
    # Small, module-consistent shapes.
    n_atoms, n_bonds, n_iter = 5, 4, 3
    in_dim, hidden_dim, out_dim = 16, 32, 15     # module parity fix -> hidden 32, out 16
    n_mlp_layer, scale_mlp = 2, 2
    B, N = 2, 8

    key = jax.random.PRNGKey(0)
    k_adj, k_node, k_hid, k_par = jax.random.split(key, 4)

    adj = jax.nn.softmax(jax.random.normal(k_adj, (B, N, N, n_bonds)), axis=-1)
    adj = 0.5 * (adj + jnp.transpose(adj, (0, 2, 1, 3)))          # symmetric bond probs
    node = jax.nn.softmax(jax.random.normal(k_node, (B, N, n_atoms)), axis=-1)
    hidden = jax.random.normal(k_hid, (B, N, hidden_dim + hidden_dim % 2))  # unused

    params = init_params(k_par, n_atoms, n_bonds, n_iter, in_dim, hidden_dim,
                         out_dim, n_mlp_layer, scale_mlp)

    fwd = jax.jit(wls_discriminator_forward)
    logit, graph_repr = fwd(params, adj, hidden, node)
    jax.block_until_ready((logit, graph_repr))

    out_dim_eff = out_dim + out_dim % 2
    assert logit.shape == (B, 1)
    assert graph_repr.shape == (B, out_dim_eff)
    assert bool(jnp.all(jnp.isfinite(logit))) and bool(jnp.all(jnp.isfinite(graph_repr)))
    print("KERNEL_OK")
</pallas_src>

<mosaic_0001>
module attributes {stable_mosaic.version = 11 : i64} {
  func.func @_fused_forward_kernel(%arg0: memref<2x8x6xf32, #tpu.memory_space<vmem>>, %arg1: memref<2x3x8x8xbf16, #tpu.memory_space<vmem>>, %arg2: memref<24x32xbf16, #tpu.memory_space<vmem>>, %arg3: memref<1x32xf32, #tpu.memory_space<vmem>>, %arg4: memref<32x64xbf16, #tpu.memory_space<vmem>>, %arg5: memref<1x64xf32, #tpu.memory_space<vmem>>, %arg6: memref<64x32xbf16, #tpu.memory_space<vmem>>, %arg7: memref<1x32xf32, #tpu.memory_space<vmem>>, %arg8: memref<1x32xf32, #tpu.memory_space<vmem>>, %arg9: memref<1x32xf32, #tpu.memory_space<vmem>>, %arg10: memref<128x32xbf16, #tpu.memory_space<vmem>>, %arg11: memref<1x32xf32, #tpu.memory_space<vmem>>, %arg12: memref<32x64xbf16, #tpu.memory_space<vmem>>, %arg13: memref<1x64xf32, #tpu.memory_space<vmem>>, %arg14: memref<64x32xbf16, #tpu.memory_space<vmem>>, %arg15: memref<1x32xf32, #tpu.memory_space<vmem>>, %arg16: memref<1x32xf32, #tpu.memory_space<vmem>>, %arg17: memref<1x32xf32, #tpu.memory_space<vmem>>, %arg18: memref<128x16xbf16, #tpu.memory_space<vmem>>, %arg19: memref<1x16xf32, #tpu.memory_space<vmem>>, %arg20: memref<16x32xbf16, #tpu.memory_space<vmem>>, %arg21: memref<1x32xf32, #tpu.memory_space<vmem>>, %arg22: memref<32x16xbf16, #tpu.memory_space<vmem>>, %arg23: memref<1x16xf32, #tpu.memory_space<vmem>>, %arg24: memref<1x16xf32, #tpu.memory_space<vmem>>, %arg25: memref<1x16xf32, #tpu.memory_space<vmem>>, %arg26: memref<1x16xf32, #tpu.memory_space<vmem>>, %arg27: memref<1x1xf32, #tpu.memory_space<vmem>>, %arg28: memref<2x1xf32, #tpu.memory_space<vmem>>, %arg29: memref<2x16xf32, #tpu.memory_space<vmem>>) attributes {dimension_semantics = [], scalar_prefetch = 0 : i64, scratch_operands = 0 : i64, tpu.core_type = #tpu.core_type<tc>} {
    %c0 = arith.constant 0 : index
    %c0_0 = arith.constant 0 : index
    %c0_1 = arith.constant 0 : index
    %0 = vector.load %arg0[%c0, %c0_0, %c0_1] : memref<2x8x6xf32, #tpu.memory_space<vmem>>, vector<2x8x6xf32>
    %1 = vector.shape_cast %0 : vector<2x8x6xf32> to vector<16x6xf32>
    %2 = vector.shape_cast %1 : vector<16x6xf32> to vector<2x8x6xf32>
    %3 = arith.truncf %2 : vector<2x8x6xf32> to vector<2x8x6xbf16>
    %c0_2 = arith.constant 0 : index
    %c0_3 = arith.constant 0 : index
    %c0_4 = arith.constant 0 : index
    %c0_5 = arith.constant 0 : index
    %4 = vector.load %arg1[%c0_2, %c0_3, %c0_4, %c0_5] : memref<2x3x8x8xbf16, #tpu.memory_space<vmem>>, vector<2x1x8x8xbf16>
    %5 = vector.shape_cast %4 : vector<2x1x8x8xbf16> to vector<2x8x8xbf16>
    "tpu.trace_start"() <{level = 10 : i32, message = "bnm,bmd->bnd"}> : () -> ()
    %cst = arith.constant dense<0.000000e+00> : vector<2x8x6xf32>
    %6 = tpu.matmul %5, %3, %cst {dimension_numbers = #tpu.dot_dimension_numbers<[2], [1], [1], [2], [0, 0, 0, 1, 1, 2], [0], [0]>} : vector<2x8x8xbf16>, vector<2x8x6xbf16>, vector<2x8x6xf32> -> vector<2x8x6xf32>
    "tpu.trace_stop"() : () -> ()
    %c0_6 = arith.constant 0 : index
    %c1 = arith.constant 1 : index
    %c0_7 = arith.constant 0 : index
    %c0_8 = arith.constant 0 : index
    %7 = vector.load %arg1[%c0_6, %c1, %c0_7, %c0_8] : memref<2x3x8x8xbf16, #tpu.memory_space<vmem>>, vector<2x1x8x8xbf16>
    %8 = vector.shape_cast %7 : vector<2x1x8x8xbf16> to vector<2x8x8xbf16>
    "tpu.trace_start"() <{level = 10 : i32, message = "bnm,bmd->bnd"}> : () -> ()
    %cst_9 = arith.constant dense<0.000000e+00> : vector<2x8x6xf32>
    %9 = tpu.matmul %8, %3, %cst_9 {dimension_numbers = #tpu.dot_dimension_numbers<[2], [1], [1], [2], [0, 0, 0, 1, 1, 2], [0], [0]>} : vector<2x8x8xbf16>, vector<2x8x6xbf16>, vector<2x8x6xf32> -> vector<2x8x6xf32>
    "tpu.trace_stop"() : () -> ()
    %c0_10 = arith.constant 0 : index
    %c2 = arith.constant 2 : index
    %c0_11 = arith.constant 0 : index
    %c0_12 = arith.constant 0 : index
    %10 = vector.load %arg1[%c0_10, %c2, %c0_11, %c0_12] : memref<2x3x8x8xbf16, #tpu.memory_space<vmem>>, vector<2x1x8x8xbf16>
    %11 = vector.shape_cast %10 : vector<2x1x8x8xbf16> to vector<2x8x8xbf16>
    "tpu.trace_start"() <{level = 10 : i32, message = "bnm,bmd->bnd"}> : () -> ()
    %cst_13 = arith.constant dense<0.000000e+00> : vector<2x8x6xf32>
    %12 = tpu.matmul %11, %3, %cst_13 {dimension_numbers = #tpu.dot_dimension_numbers<[2], [1], [1], [2], [0, 0, 0, 1, 1, 2], [0], [0]>} : vector<2x8x8xbf16>, vector<2x8x6xbf16>, vector<2x8x6xf32> -> vector<2x8x6xf32>
    "tpu.trace_stop"() : () -> ()
    %13 = tpu.concatenate %2, %6, %9, %12 in 2 : vector<2x8x6xf32>, vector<2x8x6xf32>, vector<2x8x6xf32>, vector<2x8x6xf32> -> vector<2x8x24xf32>
    %14 = vector.shape_cast %13 : vector<2x8x24xf32> to vector<16x24xf32>
    %15 = arith.truncf %14 : vector<16x24xf32> to vector<16x24xbf16>
    %c0_14 = arith.constant 0 : index
    %c0_15 = arith.constant 0 : index
    %16 = vector.load %arg2[%c0_14, %c0_15] : memref<24x32xbf16, #tpu.memory_space<vmem>>, vector<24x32xbf16>
    %cst_16 = arith.constant dense<0.000000e+00> : vector<16x32xf32>
    %17 = tpu.matmul %15, %16, %cst_16 {dimension_numbers = #tpu.dot_dimension_numbers<[1], [0], [0], [1], [0, 0, 1, 1], [], []>} : vector<16x24xbf16>, vector<24x32xbf16>, vector<16x32xf32> -> vector<16x32xf32>
    %c0_17 = arith.constant 0 : index
    %c0_18 = arith.constant 0 : index
    %18 = vector.load %arg3[%c0_17, %c0_18] : memref<1x32xf32, #tpu.memory_space<vmem>>, vector<1x32xf32>
    %19 = vector.broadcast %18 : vector<1x32xf32> to vector<16x32xf32>
    %20 = arith.addf %17, %19 : vector<16x32xf32>
    %21 = math.tanh %20 : vector<16x32xf32>
    %22 = arith.truncf %21 : vector<16x32xf32> to vector<16x32xbf16>
    %c0_19 = arith.constant 0 : index
    %c0_20 = arith.constant 0 : index
    %23 = vector.load %arg4[%c0_19, %c0_20] : memref<32x64xbf16, #tpu.memory_space<vmem>>, vector<32x64xbf16>
    %cst_21 = arith.constant dense<0.000000e+00> : vector<16x64xf32>
    %24 = tpu.matmul %22, %23, %cst_21 {dimension_numbers = #tpu.dot_dimension_numbers<[1], [0], [0], [1], [0, 0, 1, 1], [], []>} : vector<16x32xbf16>, vector<32x64xbf16>, vector<16x64xf32> -> vector<16x64xf32>
    %c0_22 = arith.constant 0 : index
    %c0_23 = arith.constant 0 : index
    %25 = vector.load %arg5[%c0_22, %c0_23] : memref<1x64xf32, #tpu.memory_space<vmem>>, vector<1x64xf32>
    %26 = vector.broadcast %25 : vector<1x64xf32> to vector<16x64xf32>
    %27 = arith.addf %24, %26 : vector<16x64xf32>
    %28 = math.tanh %27 : vector<16x64xf32>
    %29 = arith.truncf %28 : vector<16x64xf32> to vector<16x64xbf16>
    %c0_24 = arith.constant 0 : index
    %c0_25 = arith.constant 0 : index
    %30 = vector.load %arg6[%c0_24, %c0_25] : memref<64x32xbf16, #tpu.memory_space<vmem>>, vector<64x32xbf16>
    %cst_26 = arith.constant dense<0.000000e+00> : vector<16x32xf32>
    %31 = tpu.matmul %29, %30, %cst_26 {dimension_numbers = #tpu.dot_dimension_numbers<[1], [0], [0], [1], [0, 0, 1, 1], [], []>} : vector<16x64xbf16>, vector<64x32xbf16>, vector<16x32xf32> -> vector<16x32xf32>
    %c0_27 = arith.constant 0 : index
    %c0_28 = arith.constant 0 : index
    %32 = vector.load %arg7[%c0_27, %c0_28] : memref<1x32xf32, #tpu.memory_space<vmem>>, vector<1x32xf32>
    %33 = vector.broadcast %32 : vector<1x32xf32> to vector<16x32xf32>
    %34 = arith.addf %31, %33 : vector<16x32xf32>
    %35 = math.tanh %34 : vector<16x32xf32>
    %cst_29 = arith.constant dense<0.000000e+00> : vector<32xf32>
    %36 = vector.multi_reduction <add>, %35, %cst_29 [0] : vector<16x32xf32> to vector<32xf32>
    %37 = vector.shape_cast %36 : vector<32xf32> to vector<1x32xf32>
    %38 = arith.mulf %35, %35 : vector<16x32xf32>
    %cst_30 = arith.constant dense<0.000000e+00> : vector<32xf32>
    %39 = vector.multi_reduction <add>, %38, %cst_30 [0] : vector<16x32xf32> to vector<32xf32>
    %40 = vector.shape_cast %39 : vector<32xf32> to vector<1x32xf32>
    %cst_31 = arith.constant 6.250000e-02 : f32
    %41 = vector.broadcast %cst_31 : f32 to vector<1x32xf32>
    %42 = arith.mulf %37, %41 : vector<1x32xf32>
    %cst_32 = arith.constant 6.250000e-02 : f32
    %43 = vector.broadcast %cst_32 : f32 to vector<1x32xf32>
    %44 = arith.mulf %40, %43 : vector<1x32xf32>
    %45 = arith.mulf %42, %42 : vector<1x32xf32>
    %46 = arith.subf %44, %45 : vector<1x32xf32>
    %47 = vector.broadcast %42 : vector<1x32xf32> to vector<16x32xf32>
    %48 = arith.subf %35, %47 : vector<16x32xf32>
    %cst_33 = arith.constant 9.99999974E-6 : f32
    %49 = vector.broadcast %cst_33 : f32 to vector<1x32xf32>
    %50 = arith.addf %46, %49 : vector<1x32xf32>
    %51 = math.rsqrt %50 : vector<1x32xf32>
    %52 = vector.broadcast %51 : vector<1x32xf32> to vector<16x32xf32>
    %53 = arith.mulf %48, %52 : vector<16x32xf32>
    %c0_34 = arith.constant 0 : index
    %c0_35 = arith.constant 0 : index
    %54 = vector.load %arg8[%c0_34, %c0_35] : memref<1x32xf32, #tpu.memory_space<vmem>>, vector<1x32xf32>
    %55 = vector.broadcast %54 : vector<1x32xf32> to vector<16x32xf32>
    %56 = arith.mulf %53, %55 : vector<16x32xf32>
    %c0_36 = arith.constant 0 : index
    %c0_37 = arith.constant 0 : index
    %57 = vector.load %arg9[%c0_36, %c0_37] : memref<1x32xf32, #tpu.memory_space<vmem>>, vector<1x32xf32>
    %58 = vector.broadcast %57 : vector<1x32xf32> to vector<16x32xf32>
    %59 = arith.addf %56, %58 : vector<16x32xf32>
    %60 = vector.shape_cast %59 : vector<16x32xf32> to vector<2x8x32xf32>
    %61 = arith.truncf %60 : vector<2x8x32xf32> to vector<2x8x32xbf16>
    %c0_38 = arith.constant 0 : index
    %c0_39 = arith.constant 0 : index
    %c0_40 = arith.constant 0 : index
    %c0_41 = arith.constant 0 : index
    %62 = vector.load %arg1[%c0_38, %c0_39, %c0_40, %c0_41] : memref<2x3x8x8xbf16, #tpu.memory_space<vmem>>, vector<2x1x8x8xbf16>
    %63 = vector.shape_cast %62 : vector<2x1x8x8xbf16> to vector<2x8x8xbf16>
    "tpu.trace_start"() <{level = 10 : i32, message = "bnm,bmd->bnd"}> : () -> ()
    %cst_42 = arith.constant dense<0.000000e+00> : vector<2x8x32xf32>
    %64 = tpu.matmul %63, %61, %cst_42 {dimension_numbers = #tpu.dot_dimension_numbers<[2], [1], [1], [2], [0, 0, 0, 1, 1, 2], [0], [0]>} : vector<2x8x8xbf16>, vector<2x8x32xbf16>, vector<2x8x32xf32> -> vector<2x8x32xf32>
    "tpu.trace_stop"() : () -> ()
    %c0_43 = arith.constant 0 : index
    %c1_44 = arith.constant 1 : index
    %c0_45 = arith.constant 0 : index
    %c0_46 = arith.constant 0 : index
    %65 = vector.load %arg1[%c0_43, %c1_44, %c0_45, %c0_46] : memref<2x3x8x8xbf16, #tpu.memory_space<vmem>>, vector<2x1x8x8xbf16>
    %66 = vector.shape_cast %65 : vector<2x1x8x8xbf16> to vector<2x8x8xbf16>
    "tpu.trace_start"() <{level = 10 : i32, message = "bnm,bmd->bnd"}> : () -> ()
    %cst_47 = arith.constant dense<0.000000e+00> : vector<2x8x32xf32>
    %67 = tpu.matmul %66, %61, %cst_47 {dimension_numbers = #tpu.dot_dimension_numbers<[2], [1], [1], [2], [0, 0, 0, 1, 1, 2], [0], [0]>} : vector<2x8x8xbf16>, vector<2x8x32xbf16>, vector<2x8x32xf32> -> vector<2x8x32xf32>
    "tpu.trace_stop"() : () -> ()
    %c0_48 = arith.constant 0 : index
    %c2_49 = arith.constant 2 : index
    %c0_50 = arith.constant 0 : index
    %c0_51 = arith.constant 0 : index
    %68 = vector.load %arg1[%c0_48, %c2_49, %c0_50, %c0_51] : memref<2x3x8x8xbf16, #tpu.memory_space<vmem>>, vector<2x1x8x8xbf16>
    %69 = vector.shape_cast %68 : vector<2x1x8x8xbf16> to vector<2x8x8xbf16>
    "tpu.trace_start"() <{level = 10 : i32, message = "bnm,bmd->bnd"}> : () -> ()
    %cst_52 = arith.constant dense<0.000000e+00> : vector<2x8x32xf32>
    %70 = tpu.matmul %69, %61, %cst_52 {dimension_numbers = #tpu.dot_dimension_numbers<[2], [1], [1], [2], [0, 0, 0, 1, 1, 2], [0], [0]>} : vector<2x8x8xbf16>, vector<2x8x32xbf16>, vector<2x8x32xf32> -> vector<2x8x32xf32>
    "tpu.trace_stop"() : () -> ()
    %71 = tpu.concatenate %60, %64, %67, %70 in 2 : vector<2x8x32xf32>, vector<2x8x32xf32>, vector<2x8x32xf32>, vector<2x8x32xf32> -> vector<2x8x128xf32>
    %72 = vector.shape_cast %71 : vector<2x8x128xf32> to vector<16x128xf32>
    %73 = arith.truncf %72 : vector<16x128xf32> to vector<16x128xbf16>
    %c0_53 = arith.constant 0 : index
    %c0_54 = arith.constant 0 : index
    %74 = vector.load %arg10[%c0_53, %c0_54] : memref<128x32xbf16, #tpu.memory_space<vmem>>, vector<128x32xbf16>
    %cst_55 = arith.constant dense<0.000000e+00> : vector<16x32xf32>
    %75 = tpu.matmul %73, %74, %cst_55 {dimension_numbers = #tpu.dot_dimension_numbers<[1], [0], [0], [1], [0, 0, 1, 1], [], []>} : vector<16x128xbf16>, vector<128x32xbf16>, vector<16x32xf32> -> vector<16x32xf32>
    %c0_56 = arith.constant 0 : index
    %c0_57 = arith.constant 0 : index
    %76 = vector.load %arg11[%c0_56, %c0_57] : memref<1x32xf32, #tpu.memory_space<vmem>>, vector<1x32xf32>
    %77 = vector.broadcast %76 : vector<1x32xf32> to vector<16x32xf32>
    %78 = arith.addf %75, %77 : vector<16x32xf32>
    %79 = math.tanh %78 : vector<16x32xf32>
    %80 = arith.truncf %79 : vector<16x32xf32> to vector<16x32xbf16>
    %c0_58 = arith.constant 0 : index
    %c0_59 = arith.constant 0 : index
    %81 = vector.load %arg12[%c0_58, %c0_59] : memref<32x64xbf16, #tpu.memory_space<vmem>>, vector<32x64xbf16>
    %cst_60 = arith.constant dense<0.000000e+00> : vector<16x64xf32>
    %82 = tpu.matmul %80, %81, %cst_60 {dimension_numbers = #tpu.dot_dimension_numbers<[1], [0], [0], [1], [0, 0, 1, 1], [], []>} : vector<16x32xbf16>, vector<32x64xbf16>, vector<16x64xf32> -> vector<16x64xf32>
    %c0_61 = arith.constant 0 : index
    %c0_62 = arith.constant 0 : index
    %83 = vector.load %arg13[%c0_61, %c0_62] : memref<1x64xf32, #tpu.memory_space<vmem>>, vector<1x64xf32>
    %84 = vector.broadcast %83 : vector<1x64xf32> to vector<16x64xf32>
    %85 = arith.addf %82, %84 : vector<16x64xf32>
    %86 = math.tanh %85 : vector<16x64xf32>
    %87 = arith.truncf %86 : vector<16x64xf32> to vector<16x64xbf16>
    %c0_63 = arith.constant 0 : index
    %c0_64 = arith.constant 0 : index
    %88 = vector.load %arg14[%c0_63, %c0_64] : memref<64x32xbf16, #tpu.memory_space<vmem>>, vector<64x32xbf16>
    %cst_65 = arith.constant dense<0.000000e+00> : vector<16x32xf32>
    %89 = tpu.matmul %87, %88, %cst_65 {dimension_numbers = #tpu.dot_dimension_numbers<[1], [0], [0], [1], [0, 0, 1, 1], [], []>} : vector<16x64xbf16>, vector<64x32xbf16>, vector<16x32xf32> -> vector<16x32xf32>
    %c0_66 = arith.constant 0 : index
    %c0_67 = arith.constant 0 : index
    %90 = vector.load %arg15[%c0_66, %c0_67] : memref<1x32xf32, #tpu.memory_space<vmem>>, vector<1x32xf32>
    %91 = vector.broadcast %90 : vector<1x32xf32> to vector<16x32xf32>
    %92 = arith.addf %89, %91 : vector<16x32xf32>
    %93 = math.tanh %92 : vector<16x32xf32>
    %94 = arith.addf %93, %59 : vector<16x32xf32>
    %cst_68 = arith.constant dense<0.000000e+00> : vector<32xf32>
    %95 = vector.multi_reduction <add>, %94, %cst_68 [0] : vector<16x32xf32> to vector<32xf32>
    %96 = vector.shape_cast %95 : vector<32xf32> to vector<1x32xf32>
    %97 = arith.mulf %94, %94 : vector<16x32xf32>
    %cst_69 = arith.constant dense<0.000000e+00> : vector<32xf32>
    %98 = vector.multi_reduction <add>, %97, %cst_69 [0] : vector<16x32xf32> to vector<32xf32>
    %99 = vector.shape_cast %98 : vector<32xf32> to vector<1x32xf32>
    %cst_70 = arith.constant 6.250000e-02 : f32
    %100 = vector.broadcast %cst_70 : f32 to vector<1x32xf32>
    %101 = arith.mulf %96, %100 : vector<1x32xf32>
    %cst_71 = arith.constant 6.250000e-02 : f32
    %102 = vector.broadcast %cst_71 : f32 to vector<1x32xf32>
    %103 = arith.mulf %99, %102 : vector<1x32xf32>
    %104 = arith.mulf %101, %101 : vector<1x32xf32>
    %105 = arith.subf %103, %104 : vector<1x32xf32>
    %106 = vector.broadcast %101 : vector<1x32xf32> to vector<16x32xf32>
    %107 = arith.subf %94, %106 : vector<16x32xf32>
    %cst_72 = arith.constant 9.99999974E-6 : f32
    %108 = vector.broadcast %cst_72 : f32 to vector<1x32xf32>
    %109 = arith.addf %105, %108 : vector<1x32xf32>
    %110 = math.rsqrt %109 : vector<1x32xf32>
    %111 = vector.broadcast %110 : vector<1x32xf32> to vector<16x32xf32>
    %112 = arith.mulf %107, %111 : vector<16x32xf32>
    %c0_73 = arith.constant 0 : index
    %c0_74 = arith.constant 0 : index
    %113 = vector.load %arg16[%c0_73, %c0_74] : memref<1x32xf32, #tpu.memory_space<vmem>>, vector<1x32xf32>
    %114 = vector.broadcast %113 : vector<1x32xf32> to vector<16x32xf32>
    %115 = arith.mulf %112, %114 : vector<16x32xf32>
    %c0_75 = arith.constant 0 : index
    %c0_76 = arith.constant 0 : index
    %116 = vector.load %arg17[%c0_75, %c0_76] : memref<1x32xf32, #tpu.memory_space<vmem>>, vector<1x32xf32>
    %117 = vector.broadcast %116 : vector<1x32xf32> to vector<16x32xf32>
    %118 = arith.addf %115, %117 : vector<16x32xf32>
    %119 = vector.shape_cast %118 : vector<16x32xf32> to vector<2x8x32xf32>
    %120 = arith.truncf %119 : vector<2x8x32xf32> to vector<2x8x32xbf16>
    %c0_77 = arith.constant 0 : index
    %c0_78 = arith.constant 0 : index
    %c0_79 = arith.constant 0 : index
    %c0_80 = arith.constant 0 : index
    %121 = vector.load %arg1[%c0_77, %c0_78, %c0_79, %c0_80] : memref<2x3x8x8xbf16, #tpu.memory_space<vmem>>, vector<2x1x8x8xbf16>
    %122 = vector.shape_cast %121 : vector<2x1x8x8xbf16> to vector<2x8x8xbf16>
    "tpu.trace_start"() <{level = 10 : i32, message = "bnm,bmd->bnd"}> : () -> ()
    %cst_81 = arith.constant dense<0.000000e+00> : vector<2x8x32xf32>
    %123 = tpu.matmul %122, %120, %cst_81 {dimension_numbers = #tpu.dot_dimension_numbers<[2], [1], [1], [2], [0, 0, 0, 1, 1, 2], [0], [0]>} : vector<2x8x8xbf16>, vector<2x8x32xbf16>, vector<2x8x32xf32> -> vector<2x8x32xf32>
    "tpu.trace_stop"() : () -> ()
    %c0_82 = arith.constant 0 : index
    %c1_83 = arith.constant 1 : index
    %c0_84 = arith.constant 0 : index
    %c0_85 = arith.constant 0 : index
    %124 = vector.load %arg1[%c0_82, %c1_83, %c0_84, %c0_85] : memref<2x3x8x8xbf16, #tpu.memory_space<vmem>>, vector<2x1x8x8xbf16>
    %125 = vector.shape_cast %124 : vector<2x1x8x8xbf16> to vector<2x8x8xbf16>
    "tpu.trace_start"() <{level = 10 : i32, message = "bnm,bmd->bnd"}> : () -> ()
    %cst_86 = arith.constant dense<0.000000e+00> : vector<2x8x32xf32>
    %126 = tpu.matmul %125, %120, %cst_86 {dimension_numbers = #tpu.dot_dimension_numbers<[2], [1], [1], [2], [0, 0, 0, 1, 1, 2], [0], [0]>} : vector<2x8x8xbf16>, vector<2x8x32xbf16>, vector<2x8x32xf32> -> vector<2x8x32xf32>
    "tpu.trace_stop"() : () -> ()
    %c0_87 = arith.constant 0 : index
    %c2_88 = arith.constant 2 : index
    %c0_89 = arith.constant 0 : index
    %c0_90 = arith.constant 0 : index
    %127 = vector.load %arg1[%c0_87, %c2_88, %c0_89, %c0_90] : memref<2x3x8x8xbf16, #tpu.memory_space<vmem>>, vector<2x1x8x8xbf16>
    %128 = vector.shape_cast %127 : vector<2x1x8x8xbf16> to vector<2x8x8xbf16>
    "tpu.trace_start"() <{level = 10 : i32, message = "bnm,bmd->bnd"}> : () -> ()
    %cst_91 = arith.constant dense<0.000000e+00> : vector<2x8x32xf32>
    %129 = tpu.matmul %128, %120, %cst_91 {dimension_numbers = #tpu.dot_dimension_numbers<[2], [1], [1], [2], [0, 0, 0, 1, 1, 2], [0], [0]>} : vector<2x8x8xbf16>, vector<2x8x32xbf16>, vector<2x8x32xf32> -> vector<2x8x32xf32>
    "tpu.trace_stop"() : () -> ()
    %130 = tpu.concatenate %119, %123, %126, %129 in 2 : vector<2x8x32xf32>, vector<2x8x32xf32>, vector<2x8x32xf32>, vector<2x8x32xf32> -> vector<2x8x128xf32>
    %131 = vector.shape_cast %130 : vector<2x8x128xf32> to vector<16x128xf32>
    %132 = arith.truncf %131 : vector<16x128xf32> to vector<16x128xbf16>
    %c0_92 = arith.constant 0 : index
    %c0_93 = arith.constant 0 : index
    %133 = vector.load %arg18[%c0_92, %c0_93] : memref<128x16xbf16, #tpu.memory_space<vmem>>, vector<128x16xbf16>
    %cst_94 = arith.constant dense<0.000000e+00> : vector<16x16xf32>
    %134 = tpu.matmul %132, %133, %cst_94 {dimension_numbers = #tpu.dot_dimension_numbers<[1], [0], [0], [1], [0, 0, 1, 1], [], []>} : vector<16x128xbf16>, vector<128x16xbf16>, vector<16x16xf32> -> vector<16x16xf32>
    %c0_95 = arith.constant 0 : index
    %c0_96 = arith.constant 0 : index
    %135 = vector.load %arg19[%c0_95, %c0_96] : memref<1x16xf32, #tpu.memory_space<vmem>>, vector<1x16xf32>
    %136 = vector.broadcast %135 : vector<1x16xf32> to vector<16x16xf32>
    %137 = arith.addf %134, %136 : vector<16x16xf32>
    %138 = math.tanh %137 : vector<16x16xf32>
    %139 = arith.truncf %138 : vector<16x16xf32> to vector<16x16xbf16>
    %c0_97 = arith.constant 0 : index
    %c0_98 = arith.constant 0 : index
    %140 = vector.load %arg20[%c0_97, %c0_98] : memref<16x32xbf16, #tpu.memory_space<vmem>>, vector<16x32xbf16>
    %cst_99 = arith.constant dense<0.000000e+00> : vector<16x32xf32>
    %141 = tpu.matmul %139, %140, %cst_99 {dimension_numbers = #tpu.dot_dimension_numbers<[1], [0], [0], [1], [0, 0, 1, 1], [], []>} : vector<16x16xbf16>, vector<16x32xbf16>, vector<16x32xf32> -> vector<16x32xf32>
    %c0_100 = arith.constant 0 : index
    %c0_101 = arith.constant 0 : index
    %142 = vector.load %arg21[%c0_100, %c0_101] : memref<1x32xf32, #tpu.memory_space<vmem>>, vector<1x32xf32>
    %143 = vector.broadcast %142 : vector<1x32xf32> to vector<16x32xf32>
    %144 = arith.addf %141, %143 : vector<16x32xf32>
    %145 = math.tanh %144 : vector<16x32xf32>
    %146 = arith.truncf %145 : vector<16x32xf32> to vector<16x32xbf16>
    %c0_102 = arith.constant 0 : index
    %c0_103 = arith.constant 0 : index
    %147 = vector.load %arg22[%c0_102, %c0_103] : memref<32x16xbf16, #tpu.memory_space<vmem>>, vector<32x16xbf16>
    %cst_104 = arith.constant dense<0.000000e+00> : vector<16x16xf32>
    %148 = tpu.matmul %146, %147, %cst_104 {dimension_numbers = #tpu.dot_dimension_numbers<[1], [0], [0], [1], [0, 0, 1, 1], [], []>} : vector<16x32xbf16>, vector<32x16xbf16>, vector<16x16xf32> -> vector<16x16xf32>
    %c0_105 = arith.constant 0 : index
    %c0_106 = arith.constant 0 : index
    %149 = vector.load %arg23[%c0_105, %c0_106] : memref<1x16xf32, #tpu.memory_space<vmem>>, vector<1x16xf32>
    %150 = vector.broadcast %149 : vector<1x16xf32> to vector<16x16xf32>
    %151 = arith.addf %148, %150 : vector<16x16xf32>
    %152 = math.tanh %151 : vector<16x16xf32>
    %cst_107 = arith.constant dense<0.000000e+00> : vector<16xf32>
    %153 = vector.multi_reduction <add>, %152, %cst_107 [0] : vector<16x16xf32> to vector<16xf32>
    %154 = vector.shape_cast %153 : vector<16xf32> to vector<1x16xf32>
    %155 = arith.mulf %152, %152 : vector<16x16xf32>
    %cst_108 = arith.constant dense<0.000000e+00> : vector<16xf32>
    %156 = vector.multi_reduction <add>, %155, %cst_108 [0] : vector<16x16xf32> to vector<16xf32>
    %157 = vector.shape_cast %156 : vector<16xf32> to vector<1x16xf32>
    %cst_109 = arith.constant 6.250000e-02 : f32
    %158 = vector.broadcast %cst_109 : f32 to vector<1x16xf32>
    %159 = arith.mulf %154, %158 : vector<1x16xf32>
    %cst_110 = arith.constant 6.250000e-02 : f32
    %160 = vector.broadcast %cst_110 : f32 to vector<1x16xf32>
    %161 = arith.mulf %157, %160 : vector<1x16xf32>
    %162 = arith.mulf %159, %159 : vector<1x16xf32>
    %163 = arith.subf %161, %162 : vector<1x16xf32>
    %164 = vector.broadcast %159 : vector<1x16xf32> to vector<16x16xf32>
    %165 = arith.subf %152, %164 : vector<16x16xf32>
    %cst_111 = arith.constant 9.99999974E-6 : f32
    %166 = vector.broadcast %cst_111 : f32 to vector<1x16xf32>
    %167 = arith.addf %163, %166 : vector<1x16xf32>
    %168 = math.rsqrt %167 : vector<1x16xf32>
    %169 = vector.broadcast %168 : vector<1x16xf32> to vector<16x16xf32>
    %170 = arith.mulf %165, %169 : vector<16x16xf32>
    %c0_112 = arith.constant 0 : index
    %c0_113 = arith.constant 0 : index
    %171 = vector.load %arg24[%c0_112, %c0_113] : memref<1x16xf32, #tpu.memory_space<vmem>>, vector<1x16xf32>
    %172 = vector.broadcast %171 : vector<1x16xf32> to vector<16x16xf32>
    %173 = arith.mulf %170, %172 : vector<16x16xf32>
    %c0_114 = arith.constant 0 : index
    %c0_115 = arith.constant 0 : index
    %174 = vector.load %arg25[%c0_114, %c0_115] : memref<1x16xf32, #tpu.memory_space<vmem>>, vector<1x16xf32>
    %175 = vector.broadcast %174 : vector<1x16xf32> to vector<16x16xf32>
    %176 = arith.addf %173, %175 : vector<16x16xf32>
    %177 = vector.shape_cast %176 : vector<16x16xf32> to vector<2x8x16xf32>
    %cst_116 = arith.constant dense<0.000000e+00> : vector<2x16xf32>
    %178 = vector.multi_reduction <add>, %177, %cst_116 [1] : vector<2x8x16xf32> to vector<2x16xf32>
    %cst_117 = arith.constant 8.000000e+00 : f32
    %179 = vector.broadcast %cst_117 : f32 to vector<2x16xf32>
    %180 = arith.divf %178, %179 : vector<2x16xf32>
    %c0_118 = arith.constant 0 : index
    %c0_119 = arith.constant 0 : index
    %181 = vector.load %arg29[%c0_118, %c0_119] : memref<2x16xf32, #tpu.memory_space<vmem>>, vector<2x16xf32>
    tpu.vector_store %arg29[%c0_118, %c0_119], %180 {strides = array<i32>} : memref<2x16xf32, #tpu.memory_space<vmem>>, vector<2x16xf32>,
    %c0_120 = arith.constant 0 : index
    %c0_121 = arith.constant 0 : index
    %182 = vector.load %arg26[%c0_120, %c0_121] : memref<1x16xf32, #tpu.memory_space<vmem>>, vector<1x16xf32>
    %183 = vector.broadcast %182 : vector<1x16xf32> to vector<2x16xf32>
    %184 = arith.mulf %180, %183 : vector<2x16xf32>
    %cst_122 = arith.constant dense<0.000000e+00> : vector<2xf32>
    %185 = vector.multi_reduction <add>, %184, %cst_122 [1] : vector<2x16xf32> to vector<2xf32>
    %186 = vector.shape_cast %185 : vector<2xf32> to vector<2x1xf32>
    %c0_123 = arith.constant 0 : index
    %c0_124 = arith.constant 0 : index
    %187 = vector.load %arg27[%c0_123, %c0_124] : memref<1x1xf32, #tpu.memory_space<vmem>>, vector<1x1xf32>
    %188 = vector.broadcast %187 : vector<1x1xf32> to vector<2x1xf32>
    %189 = arith.addf %186, %188 : vector<2x1xf32>
    %c0_125 = arith.constant 0 : index
    %c0_126 = arith.constant 0 : index
    %190 = vector.load %arg28[%c0_125, %c0_126] : memref<2x1xf32, #tpu.memory_space<vmem>>, vector<2x1xf32>
    tpu.vector_store %arg28[%c0_125, %c0_126], %189 {strides = array<i32>} : memref<2x1xf32, #tpu.memory_space<vmem>>, vector<2x1xf32>,
    return
  }
}

</mosaic_0001>

<llo_original>
// kernel: wls_discriminator_forward.1
$region0: #{wls_discriminator_forward.1}
  #allocation0 [shape = 'u32[]', space=smem, size = 0x4, offset = 0x4, fixed_abs, tag = 'smem constant byte address 0x4 - core index']
  #allocation1 [shape = 'u32[72,128]{1,0:T(1,128)}', space=vmem, size = 0x9000, scoped, tag = 'internal scratch']
  #allocation2 [shape = 'f32[1,1]{1,0:T(1,128)S(1)}', space=vmem, size = 0x200, scoped, tag = 'scoped memory for wls_discriminator_forward.1']
  %s0 = inlined_call_operand.smem [shape: u32[30], index: -1, kind: input, shape index: {}]
  %s1 = sld [smem:[%s0]]
  %s2 = scalar_lea.smem %s0, 1
  %s3 = sld [smem:[%s2]]
  %s4 = scalar_lea.smem %s0, 2
  %s5 = sld [smem:[%s4]]
  %s6 = scalar_lea.smem %s0, 3
  %s7 = sld [smem:[%s6]]
  %s8 = scalar_lea.smem %s0, 4
  %s9 = sld [smem:[%s8]]
  %s10 = scalar_lea.smem %s0, 5
  %s11 = sld [smem:[%s10]]
  %s12 = scalar_lea.smem %s0, 6
  %s13 = sld [smem:[%s12]]
  %s14 = scalar_lea.smem %s0, 7
  %s15 = sld [smem:[%s14]]
  %s16 = scalar_lea.smem %s0, 8
  %s17 = sld [smem:[%s16]]
  %s18 = scalar_lea.smem %s0, 9
  %s19 = sld [smem:[%s18]]
  %s20 = scalar_lea.smem %s0, 10
  %s21 = sld [smem:[%s20]]
  %s22 = scalar_lea.smem %s0, 11
  %s23 = sld [smem:[%s22]]
  %s24 = scalar_lea.smem %s0, 12
  %s25 = sld [smem:[%s24]]
  %s26 = scalar_lea.smem %s0, 13
  %s27 = sld [smem:[%s26]]
  %s28 = scalar_lea.smem %s0, 14
  %s29 = sld [smem:[%s28]]
  %s30 = scalar_lea.smem %s0, 15
  %s31 = sld [smem:[%s30]]
  %s32 = scalar_lea.smem %s0, 16
  %s33 = sld [smem:[%s32]]
  %s34 = scalar_lea.smem %s0, 17
  %s35 = sld [smem:[%s34]]
  %s36 = scalar_lea.smem %s0, 18
  %s37 = sld [smem:[%s36]]
  %s38 = scalar_lea.smem %s0, 19
  %s39 = sld [smem:[%s38]]
  %s40 = scalar_lea.smem %s0, 20
  %s41 = sld [smem:[%s40]]
  %s42 = scalar_lea.smem %s0, 21
  %s43 = sld [smem:[%s42]]
  %s44 = scalar_lea.smem %s0, 22
  %s45 = sld [smem:[%s44]]
  %s46 = scalar_lea.smem %s0, 23
  %s47 = sld [smem:[%s46]]
  %s48 = scalar_lea.smem %s0, 24
  %s49 = sld [smem:[%s48]]
  %s50 = scalar_lea.smem %s0, 25
  %s51 = sld [smem:[%s50]]
  %s52 = scalar_lea.smem %s0, 26
  %s53 = sld [smem:[%s52]]
  %s54 = scalar_lea.smem %s0, 27
  %s55 = sld [smem:[%s54]]
  %s56 = scalar_lea.smem %s0, 28
  %s57 = sld [smem:[%s56]]
  %s58 = scalar_lea.smem %s0, 29
  %s59 = sld [smem:[%s58]]
  %60 = xla_tuple %s57, %s59
  %s61 = sld [smem:[#allocation0]]
  $region130: #{wls_discriminator_forward.1} parent=0
    _
  %s63 = ssub.s32 1, %s61
  %s64 = scalar_select 0, %s63, %s61
  %v65 = vstv %s55
  %66 = vst [vmem:[#allocation2] sm:$0x1] %v65
  $region1: #{wls_discriminator_forward.1} parent=0
    #allocation3 [shape = 'u8[1024]{0}', space=vmem, size = 0x400, scoped, tag = 'output window, operand 1, single buffered']
    #allocation4 [shape = 's32[1]{0}', space=sflag, size = 0x4, scoped, tag = 'scoped memory for wls_discriminator_forward.1']
    %67 = vsyncpa [#allocation4], 0
    // Predicated region
    $region2: #{wls_discriminator_forward.1} parent=1 // pred_check
      _
    $region3: #{wls_discriminator_forward.1} parent=1 // pred_check_branch
      %69 = sbr.rel (0) target = $region5
    $region4: #{wls_discriminator_forward.1} parent=1 // pred_region
      _
    $region5: #{wls_discriminator_forward.1} parent=1 // pred_fallthru
      _
    // Predicated region
    $region6: #{wls_discriminator_forward.1} parent=1 // pred_check
      _
    $region7: #{wls_discriminator_forward.1} parent=1 // pred_check_branch
      %71 = sbr.rel (0) target = $region9
    $region8: #{wls_discriminator_forward.1} parent=1 // pred_region
      _
    $region9: #{wls_discriminator_forward.1} parent=1 // pred_fallthru
      _
    // Predicated region
    $region10: #{wls_discriminator_forward.1} parent=1 // pred_check
      _
    $region11: #{wls_discriminator_forward.1} parent=1 // pred_check_branch
      %73 = sbr.rel (0) target = $region13
    $region12: #{wls_discriminator_forward.1} parent=1 // pred_region
      _
    $region13: #{wls_discriminator_forward.1} parent=1 // pred_fallthru
      _
    // Predicated region
    $region14: #{wls_discriminator_forward.1} parent=1 // pred_check
      _
    $region15: #{wls_discriminator_forward.1} parent=1 // pred_check_branch
      %75 = sbr.rel (0) target = $region17
    $region16: #{wls_discriminator_forward.1} parent=1 // pred_region
      _
    $region17: #{wls_discriminator_forward.1} parent=1 // pred_fallthru
      _
    // Predicated region
    $region18: #{wls_discriminator_forward.1} parent=1 // pred_check
      _
    $region19: #{wls_discriminator_forward.1} parent=1 // pred_check_branch
      %77 = sbr.rel (0) target = $region21
    $region20: #{wls_discriminator_forward.1} parent=1 // pred_region
      _
    $region21: #{wls_discriminator_forward.1} parent=1 // pred_fallthru
      _
    // Predicated region
    $region22: #{wls_discriminator_forward.1} parent=1 // pred_check
      _
    $region23: #{wls_discriminator_forward.1} parent=1 // pred_check_branch
      %79 = sbr.rel (0) target = $region25
    $region24: #{wls_discriminator_forward.1} parent=1 // pred_region
      _
    $region25: #{wls_discriminator_forward.1} parent=1 // pred_fallthru
      _
    // Predicated region
    $region26: #{wls_discriminator_forward.1} parent=1 // pred_check
      _
    $region27: #{wls_discriminator_forward.1} parent=1 // pred_check_branch
      %81 = sbr.rel (0) target = $region29
    $region28: #{wls_discriminator_forward.1} parent=1 // pred_region
      _
    $region29: #{wls_discriminator_forward.1} parent=1 // pred_fallthru
      _
    // Predicated region
    $region30: #{wls_discriminator_forward.1} parent=1 // pred_check
      _
    $region31: #{wls_discriminator_forward.1} parent=1 // pred_check_branch
      %83 = sbr.rel (0) target = $region33
    $region32: #{wls_discriminator_forward.1} parent=1 // pred_region
      _
    $region33: #{wls_discriminator_forward.1} parent=1 // pred_fallthru
      _
    // Predicated region
    $region34: #{wls_discriminator_forward.1} parent=1 // pred_check
      _
    $region35: #{wls_discriminator_forward.1} parent=1 // pred_check_branch
      %85 = sbr.rel (0) target = $region37
    $region36: #{wls_discriminator_forward.1} parent=1 // pred_region
      _
    $region37: #{wls_discriminator_forward.1} parent=1 // pred_fallthru
      _
    // Predicated region
    $region38: #{wls_discriminator_forward.1} parent=1 // pred_check
      _
    $region39: #{wls_discriminator_forward.1} parent=1 // pred_check_branch
      %87 = sbr.rel (0) target = $region41
    $region40: #{wls_discriminator_forward.1} parent=1 // pred_region
      _
    $region41: #{wls_discriminator_forward.1} parent=1 // pred_fallthru
      _
    // Predicated region
    $region42: #{wls_discriminator_forward.1} parent=1 // pred_check
      _
    $region43: #{wls_discriminator_forward.1} parent=1 // pred_check_branch
      %89 = sbr.rel (0) target = $region45
    $region44: #{wls_discriminator_forward.1} parent=1 // pred_region
      _
    $region45: #{wls_discriminator_forward.1} parent=1 // pred_fallthru
      _
    // Predicated region
    $region46: #{wls_discriminator_forward.1} parent=1 // pred_check
      _
    $region47: #{wls_discriminator_forward.1} parent=1 // pred_check_branch
      %91 = sbr.rel (0) target = $region49
    $region48: #{wls_discriminator_forward.1} parent=1 // pred_region
      _
    $region49: #{wls_discriminator_forward.1} parent=1 // pred_fallthru
      _
    // Predicated region
    $region50: #{wls_discriminator_forward.1} parent=1 // pred_check
      _
    $region51: #{wls_discriminator_forward.1} parent=1 // pred_check_branch
      %93 = sbr.rel (0) target = $region53
    $region52: #{wls_discriminator_forward.1} parent=1 // pred_region
      _
    $region53: #{wls_discriminator_forward.1} parent=1 // pred_fallthru
      _
    // Predicated region
    $region54: #{wls_discriminator_forward.1} parent=1 // pred_check
      _
    $region55: #{wls_discriminator_forward.1} parent=1 // pred_check_branch
      %95 = sbr.rel (0) target = $region57
    $region56: #{wls_discriminator_forward.1} parent=1 // pred_region
      _
    $region57: #{wls_discriminator_forward.1} parent=1 // pred_fallthru
      _
    // Predicated region
    $region58: #{wls_discriminator_forward.1} parent=1 // pred_check
      _
    $region59: #{wls_discriminator_forward.1} parent=1 // pred_check_branch
      %97 = sbr.rel (0) target = $region61
    $region60: #{wls_discriminator_forward.1} parent=1 // pred_region
      _
    $region61: #{wls_discriminator_forward.1} parent=1 // pred_fallthru
      _
    // Predicated region
    $region62: #{wls_discriminator_forward.1} parent=1 // pred_check
      _
    $region63: #{wls_discriminator_forward.1} parent=1 // pred_check_branch
      %99 = sbr.rel (0) target = $region65
    $region64: #{wls_discriminator_forward.1} parent=1 // pred_region
      _
    $region65: #{wls_discriminator_forward.1} parent=1 // pred_fallthru
      _
    // Predicated region
    $region66: #{wls_discriminator_forward.1} parent=1 // pred_check
      _
    $region67: #{wls_discriminator_forward.1} parent=1 // pred_check_branch
      %101 = sbr.rel (0) target = $region69
    $region68: #{wls_discriminator_forward.1} parent=1 // pred_region
      _
    $region69: #{wls_discriminator_forward.1} parent=1 // pred_fallthru
      _
    // Predicated region
    $region70: #{wls_discriminator_forward.1} parent=1 // pred_check
      _
    $region71: #{wls_discriminator_forward.1} parent=1 // pred_check_branch
      %103 = sbr.rel (0) target = $region73
    $region72: #{wls_discriminator_forward.1} parent=1 // pred_region
      _
    $region73: #{wls_discriminator_forward.1} parent=1 // pred_fallthru
      _
    // Predicated region
    $region74: #{wls_discriminator_forward.1} parent=1 // pred_check
      _
    $region75: #{wls_discriminator_forward.1} parent=1 // pred_check_branch
      %105 = sbr.rel (0) target = $region77
    $region76: #{wls_discriminator_forward.1} parent=1 // pred_region
      _
    $region77: #{wls_discriminator_forward.1} parent=1 // pred_fallthru
      _
    // Predicated region
    $region78: #{wls_discriminator_forward.1} parent=1 // pred_check
      _
    $region79: #{wls_discriminator_forward.1} parent=1 // pred_check_branch
      %107 = sbr.rel (0) target = $region81
    $region80: #{wls_discriminator_forward.1} parent=1 // pred_region
      _
    $region81: #{wls_discriminator_forward.1} parent=1 // pred_fallthru
      _
    // Predicated region
    $region82: #{wls_discriminator_forward.1} parent=1 // pred_check
      _
    $region83: #{wls_discriminator_forward.1} parent=1 // pred_check_branch
      %109 = sbr.rel (0) target = $region85
    $region84: #{wls_discriminator_forward.1} parent=1 // pred_region
      _
    $region85: #{wls_discriminator_forward.1} parent=1 // pred_fallthru
      _
    // Predicated region
    $region86: #{wls_discriminator_forward.1} parent=1 // pred_check
      _
    $region87: #{wls_discriminator_forward.1} parent=1 // pred_check_branch
      %111 = sbr.rel (0) target = $region89
    $region88: #{wls_discriminator_forward.1} parent=1 // pred_region
      _
    $region89: #{wls_discriminator_forward.1} parent=1 // pred_fallthru
      _
    // Predicated region
    $region90: #{wls_discriminator_forward.1} parent=1 // pred_check
      _
    $region91: #{wls_discriminator_forward.1} parent=1 // pred_check_branch
      %113 = sbr.rel (0) target = $region93
    $region92: #{wls_discriminator_forward.1} parent=1 // pred_region
      _
    $region93: #{wls_discriminator_forward.1} parent=1 // pred_fallthru
      _
    // Predicated region
    $region94: #{wls_discriminator_forward.1} parent=1 // pred_check
      _
    $region95: #{wls_discriminator_forward.1} parent=1 // pred_check_branch
      %115 = sbr.rel (0) target = $region97
    $region96: #{wls_discriminator_forward.1} parent=1 // pred_region
      _
    $region97: #{wls_discriminator_forward.1} parent=1 // pred_fallthru
      _
    // Predicated region
    $region98: #{wls_discriminator_forward.1} parent=1 // pred_check
      _
    $region99: #{wls_discriminator_forward.1} parent=1 // pred_check_branch
      %117 = sbr.rel (0) target = $region101
    $region100: #{wls_discriminator_forward.1} parent=1 // pred_region
      _
    $region101: #{wls_discriminator_forward.1} parent=1 // pred_fallthru
      _
    // Predicated region
    $region102: #{wls_discriminator_forward.1} parent=1 // pred_check
      _
    $region103: #{wls_discriminator_forward.1} parent=1 // pred_check_branch
      %119 = sbr.rel (0) target = $region105
    $region104: #{wls_discriminator_forward.1} parent=1 // pred_region
      _
    $region105: #{wls_discriminator_forward.1} parent=1 // pred_fallthru
      _
    // Predicated region
    $region106: #{wls_discriminator_forward.1} parent=1 // pred_check
      _
    $region107: #{wls_discriminator_forward.1} parent=1 // pred_check_branch
      %121 = sbr.rel (0) target = $region109
    $region108: #{wls_discriminator_forward.1} parent=1 // pred_region
      _
    $region109: #{wls_discriminator_forward.1} parent=1 // pred_fallthru
      _
    // Predicated region
    $region110: #{wls_discriminator_forward.1} parent=1 // pred_check
      _
    $region111: #{wls_discriminator_forward.1} parent=1 // pred_check_branch
      %123 = sbr.rel (0) target = $region113
    $region112: #{wls_discriminator_forward.1} parent=1 // pred_region
      _
    $region113: #{wls_discriminator_forward.1} parent=1 // pred_fallthru
      _
    %v125 = vld [vmem:[%s1] sm:$0xff]
    %v126 = vld [vmem:[%s1 + $0x8] sm:$0xff]
    %v127 = vpack.c.bf16 %v125, %v125
    %v128 = vpack.c.bf16 %v126, %v126
    %v129 = vld [vmem:[%s3] sm:$0xf]
    %v130 = vld [vmem:[%s3 + $0xc] sm:$0xf]
    %vm131 = vcmask 64512
    %v133 = vsel %vm131, %v129, 0
    %vm135 = vcmask 1043456
    %v137 = vsel %vm135, %v127, 0
    %139 = vmatpush.bf16.msra.mxu0 0
    %140 = vmatpush.bf16.msra.mxu0 0
    %141 = vmatpush.bf16.msra.mxu0 0
    %142 = vmatpush.bf16.msra.mxu0 0
    %143 = vmatpush.bf16.msra.mxu0 0
    %144 = vmatpush.bf16.msra.mxu0 0
    %145 = vmatpush.bf16.msra.mxu0 0
    %146 = vmatpush.bf16.msra.mxu0 %v137
    %147 = vmatmul.bf16.gmra.mxu0 %v133
    %v148 = vpop.f32.mrf.mxu0
    %v149 = vadd.f32 0.0, %v148
    %v150 = vpop.f32.mrf.mxu0
    %151 = vdwg.mxu0
    %v153 = vsel %vm131, %v130, 0
    %v156 = vsel %vm135, %v128, 0
    %158 = vmatpush.bf16.msra.mxu0 0
    %159 = vmatpush.bf16.msra.mxu0 0
    %160 = vmatpush.bf16.msra.mxu0 0
    %161 = vmatpush.bf16.msra.mxu0 0
    %162 = vmatpush.bf16.msra.mxu0 0
    %163 = vmatpush.bf16.msra.mxu0 0
    %164 = vmatpush.bf16.msra.mxu0 0
    %165 = vmatpush.bf16.msra.mxu0 %v156
    %166 = vmatmul.bf16.gmra.mxu0 %v153
    %v167 = vpop.f32.mrf.mxu0
    %v168 = vadd.f32 0.0, %v167
    %v169 = vpop.f32.mrf.mxu0
    %170 = vdwg.mxu0
    %s171 = scalar_lea.vmem %s3, 4
    %v172 = vld [vmem:[%s171] sm:$0xf]
    %v173 = vld [vmem:[%s171 + $0xc] sm:$0xf]
    %v175 = vsel %vm131, %v172, 0
    %177 = vmatpush.bf16.msra.mxu0 0
    %178 = vmatpush.bf16.msra.mxu0 0
    %179 = vmatpush.bf16.msra.mxu0 0
    %180 = vmatpush.bf16.msra.mxu0 0
    %181 = vmatpush.bf16.msra.mxu0 0
    %182 = vmatpush.bf16.msra.mxu0 0
    %183 = vmatpush.bf16.msra.mxu0 0
    %184 = vmatpush.bf16.msra.mxu0 %v137
    %185 = vmatmul.bf16.gmra.mxu0 %v175
    %v186 = vpop.f32.mrf.mxu0
    %v187 = vadd.f32 0.0, %v186
    %v188 = vpop.f32.mrf.mxu0
    %189 = vdwg.mxu0
    %v191 = vsel %vm131, %v173, 0
    %193 = vmatpush.bf16.msra.mxu0 0
    %194 = vmatpush.bf16.msra.mxu0 0
    %195 = vmatpush.bf16.msra.mxu0 0
    %196 = vmatpush.bf16.msra.mxu0 0
    %197 = vmatpush.bf16.msra.mxu0 0
    %198 = vmatpush.bf16.msra.mxu0 0
    %199 = vmatpush.bf16.msra.mxu0 0
    %200 = vmatpush.bf16.msra.mxu0 %v156
    %201 = vmatmul.bf16.gmra.mxu0 %v191
    %v202 = vpop.f32.mrf.mxu0
    %v203 = vadd.f32 0.0, %v202
    %v204 = vpop.f32.mrf.mxu0
    %205 = vdwg.mxu0
    %s206 = scalar_lea.vmem %s3, 8
    %v207 = vld [vmem:[%s206] sm:$0xf]
    %v208 = vld [vmem:[%s206 + $0xc] sm:$0xf]
    %v210 = vsel %vm131, %v207, 0
    %212 = vmatpush.bf16.msra.mxu0 0
    %213 = vmatpush.bf16.msra.mxu0 0
    %214 = vmatpush.bf16.msra.mxu0 0
    %215 = vmatpush.bf16.msra.mxu0 0
    %216 = vmatpush.bf16.msra.mxu0 0
    %217 = vmatpush.bf16.msra.mxu0 0
    %218 = vmatpush.bf16.msra.mxu0 0
    %219 = vmatpush.bf16.msra.mxu0 %v137
    %220 = vmatmul.bf16.gmra.mxu0 %v210
    %v221 = vpop.f32.mrf.mxu0
    %v222 = vadd.f32 0.0, %v221
    %v223 = vpop.f32.mrf.mxu0
    %224 = vdwg.mxu0
    %v226 = vsel %vm131, %v208, 0
    %228 = vmatpush.bf16.msra.mxu0 0
    %229 = vmatpush.bf16.msra.mxu0 0
    %230 = vmatpush.bf16.msra.mxu0 0
    %231 = vmatpush.bf16.msra.mxu0 0
    %232 = vmatpush.bf16.msra.mxu0 0
    %233 = vmatpush.bf16.msra.mxu0 0
    %234 = vmatpush.bf16.msra.mxu0 0
    %235 = vmatpush.bf16.msra.mxu0 %v156
    %236 = vmatmul.bf16.gmra.mxu0 %v226
    %v237 = vpop.f32.mrf.mxu0
    %v238 = vadd.f32 0.0, %v237
    %v239 = vpop.f32.mrf.mxu0
    %240 = vdwg.mxu0
    %243 = vrot.lane.b32.xlu0 %v149, 6
    %v244 = vpop.permute.xlu0 %243
    %245 = vrot.lane.b32.xlu0 %v168, 6
    %v246 = vpop.permute.xlu0 %245
    %251 = vrot.lane.b32.xlu0 %v187, 12
    %v252 = vpop.permute.xlu0 %251
    %253 = vrot.lane.b32.xlu0 %v203, 12
    %v254 = vpop.permute.xlu0 %253
    %259 = vrot.lane.b32.xlu0 %v222, 18
    %v260 = vpop.permute.xlu0 %259
    %261 = vrot.lane.b32.xlu0 %v238, 18
    %v262 = vpop.permute.xlu0 %261
    %vm265 = vcmask 48128
    %v266 = vsel %vm265, %v125, %v244
    %v267 = vsel %vm265, %v126, %v246
    %vm268 = vcmask 97280
    %v269 = vsel %vm268, %v266, %v252
    %v270 = vsel %vm268, %v267, %v254
    %vm271 = vcmask 146432
    %v272 = vsel %vm271, %v269, %v260
    %v273 = vsel %vm271, %v270, %v262
    %v274 = vpack.c.bf16 %v273, %v272
    %v275 = vld [vmem:[%s5] sm:$0xf]
    %v276 = vld [vmem:[%s5 + $0x4] sm:$0xf]
    %v277 = vld [vmem:[%s5 + $0x8] sm:$0xf]
    %v278 = vld [vmem:[%s7] sm:$0x1]
    %v280 = vperm.slane %v278, 0
    %v285 = vunpack.c.l.b16 %v275
    %v286 = vunpack.c.l.b16 %v276
    %v287 = vunpack.c.l.b16 %v277
    %v288 = vpack.c.b16 %v286, %v285
    %v289 = vpack.c.b16 %v287, %v287
    %vm291 = vcmask 195584
    %v293 = vsel %vm291, %v274, 0
    %v296 = vsel %vm135, %v289, 0
    %298 = vmatpush.bf16.msra.mxu0 0
    %299 = vmatpush.bf16.msra.mxu0 0
    %300 = vmatpush.bf16.msra.mxu0 0
    %301 = vmatpush.bf16.msra.mxu0 0
    %302 = vmatpush.bf16.msra.mxu0 0
    %303 = vmatpush.bf16.msra.mxu0 0
    %304 = vmatpush.bf16.msra.mxu0 %v296
    %305 = vmatpush.bf16.msra.mxu0 %v288
    %306 = vmatmul.bf16.gmra.mxu0 %v293
    %v307 = vpop.f32.mrf.mxu0
    %v308 = vadd.f32 %v280, %v307
    %v309 = vpop.f32.mrf.mxu0
    %v310 = vadd.f32 %v280, %v309
    %311 = vdwg.mxu0
    %v312 = vtanh.pop %v308
    %v313 = vtanh.pop %v310
    %v314 = vpack.c.bf16 %v313, %v312
    %v315 = vld [vmem:[%s9] sm:$0xf]
    %v316 = vld [vmem:[%s9 + $0x4] sm:$0xf]
    %v317 = vld [vmem:[%s9 + $0x8] sm:$0xf]
    %v318 = vld [vmem:[%s9 + $0xc] sm:$0xf]
    %v319 = vld [vmem:[%s11] sm:$0x1]
    %v321 = vperm.slane %v319, 0
    %v327 = vunpack.c.l.b16 %v315
    %v328 = vunpack.c.l.b16 %v316
    %v329 = vunpack.c.l.b16 %v317
    %v330 = vunpack.c.l.b16 %v318
    %v331 = vpack.c.b16 %v328, %v327
    %v332 = vpack.c.b16 %v330, %v329
    %vm335 = vcmask 261120
    %v337 = vsel %vm335, %v314, 0
    %339 = vmatpush.bf16.msra.mxu0 0
    %340 = vmatpush.bf16.msra.mxu0 0
    %341 = vmatpush.bf16.msra.mxu0 0
    %342 = vmatpush.bf16.msra.mxu0 0
    %343 = vmatpush.bf16.msra.mxu0 0
    %344 = vmatpush.bf16.msra.mxu0 0
    %345 = vmatpush.bf16.msra.mxu0 %v332
    %346 = vmatpush.bf16.msra.mxu0 %v331
    %347 = vmatmul.bf16.gmra.mxu0 %v337
    %v348 = vpop.f32.mrf.mxu0
    %v349 = vadd.f32 %v321, %v348
    %v350 = vpop.f32.mrf.mxu0
    %v351 = vadd.f32 %v321, %v350
    %352 = vdwg.mxu0
    %v353 = vtanh.pop %v349
    %v354 = vtanh.pop %v351
    %v355 = vpack.c.bf16 %v354, %v353
    %v356 = vld [vmem:[%s13] sm:$0xf]
    %v357 = vld [vmem:[%s13 + $0x4] sm:$0xf]
    %v358 = vld [vmem:[%s13 + $0x8] sm:$0xf]
    %v359 = vld [vmem:[%s13 + $0xc] sm:$0xf]
    %v360 = vld [vmem:[%s13 + $0x10] sm:$0xf]
    %v361 = vld [vmem:[%s13 + $0x14] sm:$0xf]
    %v362 = vld [vmem:[%s13 + $0x18] sm:$0xf]
    %v363 = vld [vmem:[%s13 + $0x1c] sm:$0xf]
    %v364 = vld [vmem:[%s15] sm:$0x1]
    %v366 = vperm.slane %v364, 0
    %v376 = vunpack.c.l.b16 %v356
    %v377 = vunpack.c.l.b16 %v357
    %v378 = vunpack.c.l.b16 %v358
    %v379 = vunpack.c.l.b16 %v359
    %v380 = vunpack.c.l.b16 %v360
    %v381 = vunpack.c.l.b16 %v361
    %v382 = vunpack.c.l.b16 %v362
    %v383 = vunpack.c.l.b16 %v363
    %v384 = vpack.c.b16 %v377, %v376
    %v385 = vpack.c.b16 %v379, %v378
    %v386 = vpack.c.b16 %v381, %v380
    %v387 = vpack.c.b16 %v383, %v382
    %vm392 = vcmask 523264
    %v394 = vsel %vm392, %v355, 0
    %396 = vmatpush.bf16.msra.mxu0 0
    %397 = vmatpush.bf16.msra.mxu0 0
    %398 = vmatpush.bf16.msra.mxu0 0
    %399 = vmatpush.bf16.msra.mxu0 0
    %400 = vmatpush.bf16.msra.mxu0 %v387
    %401 = vmatpush.bf16.msra.mxu0 %v386
    %402 = vmatpush.bf16.msra.mxu0 %v385
    %403 = vmatpush.bf16.msra.mxu0 %v384
    %404 = vmatmul.bf16.gmra.mxu0 %v394
    %v405 = vpop.f32.mrf.mxu0
    %v406 = vadd.f32 %v366, %v405
    %v407 = vpop.f32.mrf.mxu0
    %v408 = vadd.f32 %v366, %v407
    %409 = vdwg.mxu0
    %v410 = vtanh.pop %v406
    %v411 = vtanh.pop %v408
    %v412 = vsel %vm335, %v410, 0.0
    %v413 = vsel %vm335, %v411, 0.0
    %v414 = vadd.f32 %v412, %v413
    %v415 = vrot.slane %v414, 4
    %v416 = vadd.f32 %v414, %v415
    %v417 = vrot.slane %v416, 2
    %v418 = vadd.f32 %v416, %v417
    %v419 = vrot.slane %v418, 1
    %v420 = vadd.f32 %v418, %v419
    %v421 = vmul.f32 %v410, %v410
    %v422 = vmul.f32 %v411, %v411
    %v423 = vsel %vm335, %v421, 0.0
    %v424 = vsel %vm335, %v422, 0.0
    %v425 = vadd.f32 %v423, %v424
    %v426 = vrot.slane %v425, 4
    %v427 = vadd.f32 %v425, %v426
    %v428 = vrot.slane %v427, 2
    %v429 = vadd.f32 %v427, %v428
    %v430 = vrot.slane %v429, 1
    %v431 = vadd.f32 %v429, %v430
    %v432 = vmul.f32 %v420, 0.0625
    %v433 = vmul.f32 %v431, 0.0625
    %v434 = vmul.f32 %v432, %v432
    %v435 = vsub.f32 %v433, %v434
    %v436 = vsub.f32 %v410, %v432
    %v437 = vsub.f32 %v411, %v432
    %v438 = vadd.f32 %v435, 1e-05
    %v439 = vrsqrt.pop %v438
    %v440 = vmul.f32 %v439, %v438
    %v441 = vmul.f32 %v440, %v439
    %v442 = vmul.f32 0.5, %v441
    %v443 = vsub.f32 1.5, %v442
    %v444 = vmul.f32 %v439, %v443
    %vm445 = vweird.f32 %v438
    %vm446 = vweird.f32 %v439
    %vm447 = vmor %vm445, %vm446
    %v448 = vsel %vm447, %v439, %v444
    %v449 = vmul.f32 %v436, %v448
    %v450 = vmul.f32 %v437, %v448
    %v451 = vld [vmem:[%s17] sm:$0x1]
    %v453 = vperm.slane %v451, 0
    %v455 = vmul.f32 %v449, %v453
    %v456 = vmul.f32 %v450, %v453
    %v457 = vld [vmem:[%s19] sm:$0x1]
    %v459 = vperm.slane %v457, 0
    %v461 = vadd.f32 %v455, %v459
    %v462 = vadd.f32 %v456, %v459
    %v463 = vpack.c.bf16 %v461, %v461
    %v464 = vpack.c.bf16 %v462, %v462
    %v465 = vld [vmem:[%s3] sm:$0xf]
    %v466 = vld [vmem:[%s3 + $0xc] sm:$0xf]
    %v468 = vsel %vm131, %v465, 0
    %v471 = vsel %vm135, %v463, 0
    %473 = vmatpush.bf16.msra.mxu0 0
    %474 = vmatpush.bf16.msra.mxu0 0
    %475 = vmatpush.bf16.msra.mxu0 0
    %476 = vmatpush.bf16.msra.mxu0 0
    %477 = vmatpush.bf16.msra.mxu0 0
    %478 = vmatpush.bf16.msra.mxu0 0
    %479 = vmatpush.bf16.msra.mxu0 0
    %480 = vmatpush.bf16.msra.mxu0 %v471
    %481 = vmatmul.bf16.gmra.mxu0 %v468
    %v482 = vpop.f32.mrf.mxu0
    %v483 = vadd.f32 0.0, %v482
    %v484 = vpop.f32.mrf.mxu0
    %485 = vdwg.mxu0
    %v487 = vsel %vm131, %v466, 0
    %v490 = vsel %vm135, %v464, 0
    %492 = vmatpush.bf16.msra.mxu0 0
    %493 = vmatpush.bf16.msra.mxu0 0
    %494 = vmatpush.bf16.msra.mxu0 0
    %495 = vmatpush.bf16.msra.mxu0 0
    %496 = vmatpush.bf16.msra.mxu0 0
    %497 = vmatpush.bf16.msra.mxu0 0
    %498 = vmatpush.bf16.msra.mxu0 0
    %499 = vmatpush.bf16.msra.mxu0 %v490
    %500 = vmatmul.bf16.gmra.mxu0 %v487
    %v501 = vpop.f32.mrf.mxu0
    %v502 = vadd.f32 0.0, %v501
    %v503 = vpop.f32.mrf.mxu0
    %504 = vdwg.mxu0
    %v505 = vld [vmem:[%s171] sm:$0xf]
    %v506 = vld [vmem:[%s171 + $0xc] sm:$0xf]
    %v508 = vsel %vm131, %v505, 0
    %510 = vmatpush.bf16.msra.mxu0 0
    %511 = vmatpush.bf16.msra.mxu0 0
    %512 = vmatpush.bf16.msra.mxu0 0
    %513 = vmatpush.bf16.msra.mxu0 0
    %514 = vmatpush.bf16.msra.mxu0 0
    %515 = vmatpush.bf16.msra.mxu0 0
    %516 = vmatpush.bf16.msra.mxu0 0
    %517 = vmatpush.bf16.msra.mxu0 %v471
    %518 = vmatmul.bf16.gmra.mxu0 %v508
    %v519 = vpop.f32.mrf.mxu0
    %v520 = vadd.f32 0.0, %v519
    %v521 = vpop.f32.mrf.mxu0
    %522 = vdwg.mxu0
    %v524 = vsel %vm131, %v506, 0
    %526 = vmatpush.bf16.msra.mxu0 0
    %527 = vmatpush.bf16.msra.mxu0 0
    %528 = vmatpush.bf16.msra.mxu0 0
    %529 = vmatpush.bf16.msra.mxu0 0
    %530 = vmatpush.bf16.msra.mxu0 0
    %531 = vmatpush.bf16.msra.mxu0 0
    %532 = vmatpush.bf16.msra.mxu0 0
    %533 = vmatpush.bf16.msra.mxu0 %v490
    %534 = vmatmul.bf16.gmra.mxu0 %v524
    %v535 = vpop.f32.mrf.mxu0
    %v536 = vadd.f32 0.0, %v535
    %v537 = vpop.f32.mrf.mxu0
    %538 = vdwg.mxu0
    %v539 = vld [vmem:[%s206] sm:$0xf]
    %v540 = vld [vmem:[%s206 + $0xc] sm:$0xf]
    %v542 = vsel %vm131, %v539, 0
    %544 = vmatpush.bf16.msra.mxu0 0
    %545 = vmatpush.bf16.msra.mxu0 0
    %546 = vmatpush.bf16.msra.mxu0 0
    %547 = vmatpush.bf16.msra.mxu0 0
    %548 = vmatpush.bf16.msra.mxu0 0
    %549 = vmatpush.bf16.msra.mxu0 0
    %550 = vmatpush.bf16.msra.mxu0 0
    %551 = vmatpush.bf16.msra.mxu0 %v471
    %552 = vmatmul.bf16.gmra.mxu0 %v542
    %v553 = vpop.f32.mrf.mxu0
    %v554 = vadd.f32 0.0, %v553
    %v555 = vpop.f32.mrf.mxu0
    %556 = vdwg.mxu0
    %v558 = vsel %vm131, %v540, 0
    %560 = vmatpush.bf16.msra.mxu0 0
    %561 = vmatpush.bf16.msra.mxu0 0
    %562 = vmatpush.bf16.msra.mxu0 0
    %563 = vmatpush.bf16.msra.mxu0 0
    %564 = vmatpush.bf16.msra.mxu0 0
    %565 = vmatpush.bf16.msra.mxu0 0
    %566 = vmatpush.bf16.msra.mxu0 0
    %567 = vmatpush.bf16.msra.mxu0 %v490
    %568 = vmatmul.bf16.gmra.mxu0 %v558
    %v569 = vpop.f32.mrf.mxu0
    %v570 = vadd.f32 0.0, %v569
    %v571 = vpop.f32.mrf.mxu0
    %572 = vdwg.mxu0
    %575 = vrot.lane.b32.xlu0 %v483, 32
    %v576 = vpop.permute.xlu0 %575
    %577 = vrot.lane.b32.xlu0 %v502, 32
    %v578 = vpop.permute.xlu0 %577
    %583 = vrot.lane.b32.xlu0 %v520, 64
    %v584 = vpop.permute.xlu0 %583
    %585 = vrot.lane.b32.xlu0 %v536, 64
    %v586 = vpop.permute.xlu0 %585
    %591 = vrot.lane.b32.xlu0 %v554, 96
    %v592 = vpop.permute.xlu0 %591
    %593 = vrot.lane.b32.xlu0 %v570, 96
    %v594 = vpop.permute.xlu0 %593
    %v597 = vsel %vm335, %v461, %v576
    %v598 = vsel %vm335, %v462, %v578
    %v599 = vsel %vm392, %v597, %v584
    %v600 = vsel %vm392, %v598, %v586
    %vm601 = vcmask 785408
    %v602 = vsel %vm601, %v599, %v592
    %v603 = vsel %vm601, %v600, %v594
    %v604 = vpack.c.bf16 %v603, %v602
    %v605 = vld [vmem:[%s21] sm:$0xf]
    %v606 = vld [vmem:[%s21 + $0x4] sm:$0xf]
    %v607 = vld [vmem:[%s21 + $0x8] sm:$0xf]
    %v608 = vld [vmem:[%s21 + $0xc] sm:$0xf]
    %v609 = vld [vmem:[%s21 + $0x10] sm:$0xf]
    %v610 = vld [vmem:[%s21 + $0x14] sm:$0xf]
    %v611 = vld [vmem:[%s21 + $0x18] sm:$0xf]
    %v612 = vld [vmem:[%s21 + $0x1c] sm:$0xf]
    %v613 = vld [vmem:[%s21 + $0x20] sm:$0xf]
    %v614 = vld [vmem:[%s21 + $0x24] sm:$0xf]
    %v615 = vld [vmem:[%s21 + $0x28] sm:$0xf]
    %v616 = vld [vmem:[%s21 + $0x2c] sm:$0xf]
    %v617 = vld [vmem:[%s21 + $0x30] sm:$0xf]
    %v618 = vld [vmem:[%s21 + $0x34] sm:$0xf]
    %v619 = vld [vmem:[%s21 + $0x38] sm:$0xf]
    %v620 = vld [vmem:[%s21 + $0x3c] sm:$0xf]
    %v621 = vld [vmem:[%s23] sm:$0x1]
    %v623 = vperm.slane %v621, 0
    %v641 = vunpack.c.l.b16 %v605
    %v642 = vunpack.c.l.b16 %v606
    %v643 = vunpack.c.l.b16 %v607
    %v644 = vunpack.c.l.b16 %v608
    %v645 = vunpack.c.l.b16 %v609
    %v646 = vunpack.c.l.b16 %v610
    %v647 = vunpack.c.l.b16 %v611
    %v648 = vunpack.c.l.b16 %v612
    %v649 = vunpack.c.l.b16 %v613
    %v650 = vunpack.c.l.b16 %v614
    %v651 = vunpack.c.l.b16 %v615
    %v652 = vunpack.c.l.b16 %v616
    %v653 = vunpack.c.l.b16 %v617
    %v654 = vunpack.c.l.b16 %v618
    %v655 = vunpack.c.l.b16 %v619
    %v656 = vunpack.c.l.b16 %v620
    %v657 = vpack.c.b16 %v642, %v641
    %v658 = vpack.c.b16 %v644, %v643
    %v659 = vpack.c.b16 %v646, %v645
    %v660 = vpack.c.b16 %v648, %v647
    %v661 = vpack.c.b16 %v650, %v649
    %v662 = vpack.c.b16 %v652, %v651
    %v663 = vpack.c.b16 %v654, %v653
    %v664 = vpack.c.b16 %v656, %v655
    %673 = vmatpush.bf16.msra.mxu0 %v664
    %674 = vmatpush.bf16.msra.mxu0 %v663
    %675 = vmatpush.bf16.msra.mxu0 %v662
    %676 = vmatpush.bf16.msra.mxu0 %v661
    %677 = vmatpush.bf16.msra.mxu0 %v660
    %678 = vmatpush.bf16.msra.mxu0 %v659
    %679 = vmatpush.bf16.msra.mxu0 %v658
    %680 = vmatpush.bf16.msra.mxu0 %v657
    %681 = vmatmul.bf16.gmra.mxu0 %v604
    %v682 = vpop.f32.mrf.mxu0
    %v683 = vadd.f32 %v623, %v682
    %v684 = vpop.f32.mrf.mxu0
    %v685 = vadd.f32 %v623, %v684
    %686 = vdwg.mxu0
    %v687 = vtanh.pop %v683
    %v688 = vtanh.pop %v685
    %v689 = vpack.c.bf16 %v688, %v687
    %v690 = vld [vmem:[%s25] sm:$0xf]
    %v691 = vld [vmem:[%s25 + $0x4] sm:$0xf]
    %v692 = vld [vmem:[%s25 + $0x8] sm:$0xf]
    %v693 = vld [vmem:[%s25 + $0xc] sm:$0xf]
    %v694 = vld [vmem:[%s27] sm:$0x1]
    %v696 = vperm.slane %v694, 0
    %v702 = vunpack.c.l.b16 %v690
    %v703 = vunpack.c.l.b16 %v691
    %v704 = vunpack.c.l.b16 %v692
    %v705 = vunpack.c.l.b16 %v693
    %v706 = vpack.c.b16 %v703, %v702
    %v707 = vpack.c.b16 %v705, %v704
    %v711 = vsel %vm335, %v689, 0
    %713 = vmatpush.bf16.msra.mxu0 0
    %714 = vmatpush.bf16.msra.mxu0 0
    %715 = vmatpush.bf16.msra.mxu0 0
    %716 = vmatpush.bf16.msra.mxu0 0
    %717 = vmatpush.bf16.msra.mxu0 0
    %718 = vmatpush.bf16.msra.mxu0 0
    %719 = vmatpush.bf16.msra.mxu0 %v707
    %720 = vmatpush.bf16.msra.mxu0 %v706
    %721 = vmatmul.bf16.gmra.mxu0 %v711
    %v722 = vpop.f32.mrf.mxu0
    %v723 = vadd.f32 %v696, %v722
    %v724 = vpop.f32.mrf.mxu0
    %v725 = vadd.f32 %v696, %v724
    %726 = vdwg.mxu0
    %v727 = vtanh.pop %v723
    %v728 = vtanh.pop %v725
    %v729 = vpack.c.bf16 %v728, %v727
    %v730 = vld [vmem:[%s29] sm:$0xf]
    %v731 = vld [vmem:[%s29 + $0x4] sm:$0xf]
    %v732 = vld [vmem:[%s29 + $0x8] sm:$0xf]
    %v733 = vld [vmem:[%s29 + $0xc] sm:$0xf]
    %v734 = vld [vmem:[%s29 + $0x10] sm:$0xf]
    %v735 = vld [vmem:[%s29 + $0x14] sm:$0xf]
    %v736 = vld [vmem:[%s29 + $0x18] sm:$0xf]
    %v737 = vld [vmem:[%s29 + $0x1c] sm:$0xf]
    %v738 = vld [vmem:[%s31] sm:$0x1]
    %v740 = vperm.slane %v738, 0
    %v750 = vunpack.c.l.b16 %v730
    %v751 = vunpack.c.l.b16 %v731
    %v752 = vunpack.c.l.b16 %v732
    %v753 = vunpack.c.l.b16 %v733
    %v754 = vunpack.c.l.b16 %v734
    %v755 = vunpack.c.l.b16 %v735
    %v756 = vunpack.c.l.b16 %v736
    %v757 = vunpack.c.l.b16 %v737
    %v758 = vpack.c.b16 %v751, %v750
    %v759 = vpack.c.b16 %v753, %v752
    %v760 = vpack.c.b16 %v755, %v754
    %v761 = vpack.c.b16 %v757, %v756
    %v767 = vsel %vm392, %v729, 0
    %769 = vmatpush.bf16.msra.mxu0 0
    %770 = vmatpush.bf16.msra.mxu0 0
    %771 = vmatpush.bf16.msra.mxu0 0
    %772 = vmatpush.bf16.msra.mxu0 0
    %773 = vmatpush.bf16.msra.mxu0 %v761
    %774 = vmatpush.bf16.msra.mxu0 %v760
    %775 = vmatpush.bf16.msra.mxu0 %v759
    %776 = vmatpush.bf16.msra.mxu0 %v758
    %777 = vmatmul.bf16.gmra.mxu0 %v767
    %v778 = vpop.f32.mrf.mxu0
    %v779 = vadd.f32 %v740, %v778
    %v780 = vpop.f32.mrf.mxu0
    %v781 = vadd.f32 %v740, %v780
    %782 = vdwg.mxu0
    %v783 = vtanh.pop %v779
    %v784 = vtanh.pop %v781
    %v785 = vadd.f32 %v783, %v461
    %v786 = vadd.f32 %v784, %v462
    %v787 = vsel %vm335, %v785, 0.0
    %v788 = vsel %vm335, %v786, 0.0
    %v789 = vadd.f32 %v787, %v788
    %v790 = vrot.slane %v789, 4
    %v791 = vadd.f32 %v789, %v790
    %v792 = vrot.slane %v791, 2
    %v793 = vadd.f32 %v791, %v792
    %v794 = vrot.slane %v793, 1
    %v795 = vadd.f32 %v793, %v794
    %v796 = vmul.f32 %v785, %v785
    %v797 = vmul.f32 %v786, %v786
    %v798 = vsel %vm335, %v796, 0.0
    %v799 = vsel %vm335, %v797, 0.0
    %v800 = vadd.f32 %v798, %v799
    %v801 = vrot.slane %v800, 4
    %v802 = vadd.f32 %v800, %v801
    %v803 = vrot.slane %v802, 2
    %v804 = vadd.f32 %v802, %v803
    %v805 = vrot.slane %v804, 1
    %v806 = vadd.f32 %v804, %v805
    %v807 = vmul.f32 %v795, 0.0625
    %v808 = vmul.f32 %v806, 0.0625
    %v809 = vmul.f32 %v807, %v807
    %v810 = vsub.f32 %v808, %v809
    %v811 = vsub.f32 %v785, %v807
    %v812 = vsub.f32 %v786, %v807
    %v813 = vadd.f32 %v810, 1e-05
    %v814 = vrsqrt.pop %v813
    %v815 = vmul.f32 %v814, %v813
    %v816 = vmul.f32 %v815, %v814
    %v817 = vmul.f32 0.5, %v816
    %v818 = vsub.f32 1.5, %v817
    %v819 = vmul.f32 %v814, %v818
    %vm820 = vweird.f32 %v813
    %vm821 = vweird.f32 %v814
    %vm822 = vmor %vm820, %vm821
    %v823 = vsel %vm822, %v814, %v819
    %v824 = vmul.f32 %v811, %v823
    %v825 = vmul.f32 %v812, %v823
    %v826 = vld [vmem:[%s33] sm:$0x1]
    %v828 = vperm.slane %v826, 0
    %v830 = vmul.f32 %v824, %v828
    %v831 = vmul.f32 %v825, %v828
    %v832 = vld [vmem:[%s35] sm:$0x1]
    %v834 = vperm.slane %v832, 0
    %v836 = vadd.f32 %v830, %v834
    %v837 = vadd.f32 %v831, %v834
    %v838 = vpack.c.bf16 %v836, %v836
    %v839 = vpack.c.bf16 %v837, %v837
    %v840 = vld [vmem:[%s3] sm:$0xf]
    %v841 = vld [vmem:[%s3 + $0xc] sm:$0xf]
    %v843 = vsel %vm131, %v840, 0
    %v846 = vsel %vm135, %v838, 0
    %848 = vmatpush.bf16.msra.mxu0 0
    %849 = vmatpush.bf16.msra.mxu0 0
    %850 = vmatpush.bf16.msra.mxu0 0
    %851 = vmatpush.bf16.msra.mxu0 0
    %852 = vmatpush.bf16.msra.mxu0 0
    %853 = vmatpush.bf16.msra.mxu0 0
    %854 = vmatpush.bf16.msra.mxu0 0
    %855 = vmatpush.bf16.msra.mxu0 %v846
    %856 = vmatmul.bf16.gmra.mxu0 %v843
    %v857 = vpop.f32.mrf.mxu0
    %v858 = vadd.f32 0.0, %v857
    %v859 = vpop.f32.mrf.mxu0
    %860 = vdwg.mxu0
    %v862 = vsel %vm131, %v841, 0
    %v865 = vsel %vm135, %v839, 0
    %867 = vmatpush.bf16.msra.mxu0 0
    %868 = vmatpush.bf16.msra.mxu0 0
    %869 = vmatpush.bf16.msra.mxu0 0
    %870 = vmatpush.bf16.msra.mxu0 0
    %871 = vmatpush.bf16.msra.mxu0 0
    %872 = vmatpush.bf16.msra.mxu0 0
    %873 = vmatpush.bf16.msra.mxu0 0
    %874 = vmatpush.bf16.msra.mxu0 %v865
    %875 = vmatmul.bf16.gmra.mxu0 %v862
    %v876 = vpop.f32.mrf.mxu0
    %v877 = vadd.f32 0.0, %v876
    %v878 = vpop.f32.mrf.mxu0
    %879 = vdwg.mxu0
    %v880 = vld [vmem:[%s171] sm:$0xf]
    %v881 = vld [vmem:[%s171 + $0xc] sm:$0xf]
    %v883 = vsel %vm131, %v880, 0
    %885 = vmatpush.bf16.msra.mxu0 0
    %886 = vmatpush.bf16.msra.mxu0 0
    %887 = vmatpush.bf16.msra.mxu0 0
    %888 = vmatpush.bf16.msra.mxu0 0
    %889 = vmatpush.bf16.msra.mxu0 0
    %890 = vmatpush.bf16.msra.mxu0 0
    %891 = vmatpush.bf16.msra.mxu0 0
    %892 = vmatpush.bf16.msra.mxu0 %v846
    %893 = vmatmul.bf16.gmra.mxu0 %v883
    %v894 = vpop.f32.mrf.mxu0
    %v895 = vadd.f32 0.0, %v894
    %v896 = vpop.f32.mrf.mxu0
    %897 = vdwg.mxu0
    %v899 = vsel %vm131, %v881, 0
    %901 = vmatpush.bf16.msra.mxu0 0
    %902 = vmatpush.bf16.msra.mxu0 0
    %903 = vmatpush.bf16.msra.mxu0 0
    %904 = vmatpush.bf16.msra.mxu0 0
    %905 = vmatpush.bf16.msra.mxu0 0
    %906 = vmatpush.bf16.msra.mxu0 0
    %907 = vmatpush.bf16.msra.mxu0 0
    %908 = vmatpush.bf16.msra.mxu0 %v865
    %909 = vmatmul.bf16.gmra.mxu0 %v899
    %v910 = vpop.f32.mrf.mxu0
    %v911 = vadd.f32 0.0, %v910
    %v912 = vpop.f32.mrf.mxu0
    %913 = vdwg.mxu0
    %v914 = vld [vmem:[%s206] sm:$0xf]
    %v915 = vld [vmem:[%s206 + $0xc] sm:$0xf]
    %v917 = vsel %vm131, %v914, 0
    %919 = vmatpush.bf16.msra.mxu0 0
    %920 = vmatpush.bf16.msra.mxu0 0
    %921 = vmatpush.bf16.msra.mxu0 0
    %922 = vmatpush.bf16.msra.mxu0 0
    %923 = vmatpush.bf16.msra.mxu0 0
    %924 = vmatpush.bf16.msra.mxu0 0
    %925 = vmatpush.bf16.msra.mxu0 0
    %926 = vmatpush.bf16.msra.mxu0 %v846
    %927 = vmatmul.bf16.gmra.mxu0 %v917
    %v928 = vpop.f32.mrf.mxu0
    %v929 = vadd.f32 0.0, %v928
    %v930 = vpop.f32.mrf.mxu0
    %931 = vdwg.mxu0
    %v933 = vsel %vm131, %v915, 0
    %935 = vmatpush.bf16.msra.mxu0 0
    %936 = vmatpush.bf16.msra.mxu0 0
    %937 = vmatpush.bf16.msra.mxu0 0
    %938 = vmatpush.bf16.msra.mxu0 0
    %939 = vmatpush.bf16.msra.mxu0 0
    %940 = vmatpush.bf16.msra.mxu0 0
    %941 = vmatpush.bf16.msra.mxu0 0
    %942 = vmatpush.bf16.msra.mxu0 %v865
    %943 = vmatmul.bf16.gmra.mxu0 %v933
    %v944 = vpop.f32.mrf.mxu0
    %v945 = vadd.f32 0.0, %v944
    %v946 = vpop.f32.mrf.mxu0
    %947 = vdwg.mxu0
    %950 = vrot.lane.b32.xlu0 %v858, 32
    %v951 = vpop.permute.xlu0 %950
    %952 = vrot.lane.b32.xlu0 %v877, 32
    %v953 = vpop.permute.xlu0 %952
    %958 = vrot.lane.b32.xlu0 %v895, 64
    %v959 = vpop.permute.xlu0 %958
    %960 = vrot.lane.b32.xlu0 %v911, 64
    %v961 = vpop.permute.xlu0 %960
    %966 = vrot.lane.b32.xlu0 %v929, 96
    %v967 = vpop.permute.xlu0 %966
    %968 = vrot.lane.b32.xlu0 %v945, 96
    %v969 = vpop.permute.xlu0 %968
    %v972 = vsel %vm335, %v836, %v951
    %v973 = vsel %vm335, %v837, %v953
    %v974 = vsel %vm392, %v972, %v959
    %v975 = vsel %vm392, %v973, %v961
    %v976 = vsel %vm601, %v974, %v967
    %v977 = vsel %vm601, %v975, %v969
    %v978 = vpack.c.bf16 %v977, %v976
    %v979 = vld [vmem:[%s37] sm:$0xf]
    %v980 = vld [vmem:[%s37 + $0x4] sm:$0xf]
    %v981 = vld [vmem:[%s37 + $0x8] sm:$0xf]
    %v982 = vld [vmem:[%s37 + $0xc] sm:$0xf]
    %v983 = vld [vmem:[%s37 + $0x10] sm:$0xf]
    %v984 = vld [vmem:[%s37 + $0x14] sm:$0xf]
    %v985 = vld [vmem:[%s37 + $0x18] sm:$0xf]
    %v986 = vld [vmem:[%s37 + $0x1c] sm:$0xf]
    %v987 = vld [vmem:[%s37 + $0x20] sm:$0xf]
    %v988 = vld [vmem:[%s37 + $0x24] sm:$0xf]
    %v989 = vld [vmem:[%s37 + $0x28] sm:$0xf]
    %v990 = vld [vmem:[%s37 + $0x2c] sm:$0xf]
    %v991 = vld [vmem:[%s37 + $0x30] sm:$0xf]
    %v992 = vld [vmem:[%s37 + $0x34] sm:$0xf]
    %v993 = vld [vmem:[%s37 + $0x38] sm:$0xf]
    %v994 = vld [vmem:[%s37 + $0x3c] sm:$0xf]
    %v995 = vld [vmem:[%s39] sm:$0x1]
    %v997 = vperm.slane %v995, 0
    %v1015 = vunpack.c.l.b16 %v979
    %v1016 = vunpack.c.l.b16 %v980
    %v1017 = vunpack.c.l.b16 %v981
    %v1018 = vunpack.c.l.b16 %v982
    %v1019 = vunpack.c.l.b16 %v983
    %v1020 = vunpack.c.l.b16 %v984
    %v1021 = vunpack.c.l.b16 %v985
    %v1022 = vunpack.c.l.b16 %v986
    %v1023 = vunpack.c.l.b16 %v987
    %v1024 = vunpack.c.l.b16 %v988
    %v1025 = vunpack.c.l.b16 %v989
    %v1026 = vunpack.c.l.b16 %v990
    %v1027 = vunpack.c.l.b16 %v991
    %v1028 = vunpack.c.l.b16 %v992
    %v1029 = vunpack.c.l.b16 %v993
    %v1030 = vunpack.c.l.b16 %v994
    %v1031 = vpack.c.b16 %v1016, %v1015
    %v1032 = vpack.c.b16 %v1018, %v1017
    %v1033 = vpack.c.b16 %v1020, %v1019
    %v1034 = vpack.c.b16 %v1022, %v1021
    %v1035 = vpack.c.b16 %v1024, %v1023
    %v1036 = vpack.c.b16 %v1026, %v1025
    %v1037 = vpack.c.b16 %v1028, %v1027
    %v1038 = vpack.c.b16 %v1030, %v1029
    %1047 = vmatpush.bf16.msra.mxu0 %v1038
    %1048 = vmatpush.bf16.msra.mxu0 %v1037
    %1049 = vmatpush.bf16.msra.mxu0 %v1036
    %1050 = vmatpush.bf16.msra.mxu0 %v1035
    %1051 = vmatpush.bf16.msra.mxu0 %v1034
    %1052 = vmatpush.bf16.msra.mxu0 %v1033
    %1053 = vmatpush.bf16.msra.mxu0 %v1032
    %1054 = vmatpush.bf16.msra.mxu0 %v1031
    %1055 = vmatmul.bf16.gmra.mxu0 %v978
    %v1056 = vpop.f32.mrf.mxu0
    %v1057 = vadd.f32 %v997, %v1056
    %v1058 = vpop.f32.mrf.mxu0
    %v1059 = vadd.f32 %v997, %v1058
    %1060 = vdwg.mxu0
    %v1061 = vtanh.pop %v1057
    %v1062 = vtanh.pop %v1059
    %v1063 = vpack.c.bf16 %v1062, %v1061
    %v1064 = vld [vmem:[%s41] sm:$0xf]
    %v1065 = vld [vmem:[%s41 + $0x4] sm:$0xf]
    %v1066 = vld [vmem:[%s43] sm:$0x1]
    %v1068 = vperm.slane %v1066, 0
    %v1072 = vunpack.c.l.b16 %v1064
    %v1073 = vunpack.c.l.b16 %v1065
    %v1074 = vpack.c.b16 %v1073, %v1072
    %vm1076 = vcmask 130048
    %v1078 = vsel %vm1076, %v1063, 0
    %1080 = vmatpush.bf16.msra.mxu0 0
    %1081 = vmatpush.bf16.msra.mxu0 0
    %1082 = vmatpush.bf16.msra.mxu0 0
    %1083 = vmatpush.bf16.msra.mxu0 0
    %1084 = vmatpush.bf16.msra.mxu0 0
    %1085 = vmatpush.bf16.msra.mxu0 0
    %1086 = vmatpush.bf16.msra.mxu0 0
    %1087 = vmatpush.bf16.msra.mxu0 %v1074
    %1088 = vmatmul.bf16.gmra.mxu0 %v1078
    %v1089 = vpop.f32.mrf.mxu0
    %v1090 = vadd.f32 %v1068, %v1089
    %v1091 = vpop.f32.mrf.mxu0
    %v1092 = vadd.f32 %v1068, %v1091
    %1093 = vdwg.mxu0
    %v1094 = vtanh.pop %v1090
    %v1095 = vtanh.pop %v1092
    %v1096 = vpack.c.bf16 %v1095, %v1094
    %v1097 = vld [vmem:[%s45] sm:$0xf]
    %v1098 = vld [vmem:[%s45 + $0x4] sm:$0xf]
    %v1099 = vld [vmem:[%s45 + $0x8] sm:$0xf]
    %v1100 = vld [vmem:[%s45 + $0xc] sm:$0xf]
    %v1101 = vld [vmem:[%s47] sm:$0x1]
    %v1103 = vperm.slane %v1101, 0
    %v1109 = vunpack.c.l.b16 %v1097
    %v1110 = vunpack.c.l.b16 %v1098
    %v1111 = vunpack.c.l.b16 %v1099
    %v1112 = vunpack.c.l.b16 %v1100
    %v1113 = vpack.c.b16 %v1110, %v1109
    %v1114 = vpack.c.b16 %v1112, %v1111
    %v1118 = vsel %vm335, %v1096, 0
    %1120 = vmatpush.bf16.msra.mxu0 0
    %1121 = vmatpush.bf16.msra.mxu0 0
    %1122 = vmatpush.bf16.msra.mxu0 0
    %1123 = vmatpush.bf16.msra.mxu0 0
    %1124 = vmatpush.bf16.msra.mxu0 0
    %1125 = vmatpush.bf16.msra.mxu0 0
    %1126 = vmatpush.bf16.msra.mxu0 %v1114
    %1127 = vmatpush.bf16.msra.mxu0 %v1113
    %1128 = vmatmul.bf16.gmra.mxu0 %v1118
    %v1129 = vpop.f32.mrf.mxu0
    %v1130 = vadd.f32 %v1103, %v1129
    %v1131 = vpop.f32.mrf.mxu0
    %v1132 = vadd.f32 %v1103, %v1131
    %1133 = vdwg.mxu0
    %v1134 = vtanh.pop %v1130
    %v1135 = vtanh.pop %v1132
    %v1136 = vsel %vm1076, %v1134, 0.0
    %v1137 = vsel %vm1076, %v1135, 0.0
    %v1138 = vadd.f32 %v1136, %v1137
    %v1139 = vrot.slane %v1138, 4
    %v1140 = vadd.f32 %v1138, %v1139
    %v1141 = vrot.slane %v1140, 2
    %v1142 = vadd.f32 %v1140, %v1141
    %v1143 = vrot.slane %v1142, 1
    %v1144 = vadd.f32 %v1142, %v1143
    %v1145 = vmul.f32 %v1134, %v1134
    %v1146 = vmul.f32 %v1135, %v1135
    %v1147 = vsel %vm1076, %v1145, 0.0
    %v1148 = vsel %vm1076, %v1146, 0.0
    %v1149 = vadd.f32 %v1147, %v1148
    %v1150 = vrot.slane %v1149, 4
    %v1151 = vadd.f32 %v1149, %v1150
    %v1152 = vrot.slane %v1151, 2
    %v1153 = vadd.f32 %v1151, %v1152
    %v1154 = vrot.slane %v1153, 1
    %v1155 = vadd.f32 %v1153, %v1154
    %v1156 = vmul.f32 %v1144, 0.0625
    %v1157 = vmul.f32 %v1155, 0.0625
    %v1158 = vmul.f32 %v1156, %v1156
    %v1159 = vsub.f32 %v1157, %v1158
    %v1160 = vsub.f32 %v1134, %v1156
    %v1161 = vsub.f32 %v1135, %v1156
    %v1162 = vadd.f32 %v1159, 1e-05
    %v1163 = vrsqrt.pop %v1162
    %v1164 = vmul.f32 %v1163, %v1162
    %v1165 = vmul.f32 %v1164, %v1163
    %v1166 = vmul.f32 0.5, %v1165
    %v1167 = vsub.f32 1.5, %v1166
    %v1168 = vmul.f32 %v1163, %v1167
    %vm1169 = vweird.f32 %v1162
    %vm1170 = vweird.f32 %v1163
    %vm1171 = vmor %vm1169, %vm1170
    %v1172 = vsel %vm1171, %v1163, %v1168
    %v1173 = vmul.f32 %v1160, %v1172
    %v1174 = vmul.f32 %v1161, %v1172
    %v1175 = vld [vmem:[%s49] sm:$0x1]
    %v1177 = vperm.slane %v1175, 0
    %v1179 = vmul.f32 %v1173, %v1177
    %v1180 = vmul.f32 %v1174, %v1177
    %v1181 = vld [vmem:[%s51] sm:$0x1]
    %v1183 = vperm.slane %v1181, 0
    %v1185 = vadd.f32 %v1179, %v1183
    %v1186 = vadd.f32 %v1180, %v1183
    %v1187 = vsel %vm1076, %v1185, 0.0
    %v1188 = vrot.slane %v1187, 4
    %v1189 = vadd.f32 %v1187, %v1188
    %v1190 = vrot.slane %v1189, 2
    %v1191 = vadd.f32 %v1189, %v1190
    %v1192 = vrot.slane %v1191, 1
    %v1193 = vadd.f32 %v1191, %v1192
    %v1194 = vsel %vm1076, %v1186, 0.0
    %v1195 = vrot.slane %v1194, 4
    %v1196 = vadd.f32 %v1194, %v1195
    %v1197 = vrot.slane %v1196, 2
    %v1198 = vadd.f32 %v1196, %v1197
    %v1199 = vrot.slane %v1198, 1
    %v1200 = vadd.f32 %v1198, %v1199
    %v1201 = vrcp.pop 8.0
    %v1202 = vmul.f32 8.0, %v1201
    %v1203 = vsub.f32 1.0, %v1202
    %v1204 = vmul.f32 %v1201, %v1203
    %v1205 = vadd.f32 %v1201, %v1204
    %vm1206 = vweird.f32 %v1201
    %v1207 = vsel %vm1206, %v1201, %v1205
    %v1208 = vmul.f32 %v1193, %v1207
    %v1209 = vmul.f32 %v1200, %v1207
    %vm1212 = vcmask 1041409
    %v1213 = vsel %vm1212, %v1209, %v1208
    %vm1215 = vcmask 123904
    %1216 = vst.msk [vmem:[#allocation3] sm:$0x3] %vm1215, %v1213
    %v1217 = vld [vmem:[%s53] sm:$0x1]
    %v1219 = vperm.slane %v1217, 0
    %v1221 = vmul.f32 %v1208, %v1219
    %v1222 = vmul.f32 %v1209, %v1219
    %v1225 = vrot.slane %v1222, 7
    %v1226 = vsel %vm1212, %v1225, %v1221
    %v1228 = vsel %vm1215, %v1226, 0.0
    %1229 = vadd.xlane.f32.xlu0 %v1228
    %v1230 = vpop.xlane.xlu0 %1229
    %v1231 = vld [vmem:[#allocation2] sm:$0x1]
    %v1233 = vperm.slane %v1231, 0
    %v1235 = vadd.f32 %v1230, %v1233
    %vm1236 = vcmask 1024
    %1237 = vst.msk [vmem:[%s57] sm:$0x3] %vm1236, %v1235
    // Predicated region
    $region114: #{wls_discriminator_forward.1} parent=1 // pred_check
      _
    $region115: #{wls_discriminator_forward.1} parent=1 // pred_check_branch
      %1239 = sbr.rel (0) target = $region117
    $region116: #{wls_discriminator_forward.1} parent=1 // pred_region
      _
    $region117: #{wls_discriminator_forward.1} parent=1 // pred_fallthru
      _
    // Predicated region
    $region118: #{wls_discriminator_forward.1} parent=1 // pred_check
      _
    $region119: #{wls_discriminator_forward.1} parent=1 // pred_check_branch
      %1241 = sbr.rel (0) target = $region121
    $region120: #{wls_discriminator_forward.1} parent=1 // pred_region
      %1243 = vsyncadd [#allocation4], 0
      %s1245 = sshll.u32 [#allocation3], 4
      %s1246 = int_to_ptr.vmem [resolvable:$true] %s1245
      %s1247 = sshll.u32 %s59, 4
      %s1248 = int_to_ptr.hbm [resolvable:$true] %s1247
      %1250 = dma.vmem_to_hbm [thread:$0]  %s1246, 32, %s1248, [#allocation4]
    $region121: #{wls_discriminator_forward.1} parent=1 // pred_fallthru
      _
    // Predicated region
    $region122: #{wls_discriminator_forward.1} parent=1 // pred_check
      _
    $region123: #{wls_discriminator_forward.1} parent=1 // pred_check_branch
      %1252 = sbr.rel (0) target = $region125
    $region124: #{wls_discriminator_forward.1} parent=1 // pred_region
      _
    $region125: #{wls_discriminator_forward.1} parent=1 // pred_fallthru
      _
    // Predicated region
    $region126: #{wls_discriminator_forward.1} parent=1 // pred_check
      _
    $region127: #{wls_discriminator_forward.1} parent=1 // pred_check_branch
      %1254 = sbr.rel (0) target = $region129
    $region128: #{wls_discriminator_forward.1} parent=1 // pred_region
      %1256 = dma.done [#allocation4], 32
    $region129: #{wls_discriminator_forward.1} parent=1 // pred_fallthru
      _
    %1257 = vsyncpa [#allocation4], 1

</llo_original>
